<compile_context>
chip_gen: v5e
topology: v5e:2x2
jax: 0.10.0
libtpu: 0.0.40
codegen_flags: <defaults>
</compile_context>

<pallas_src>
import functools
import math

import jax
import jax.numpy as jnp
from jax.experimental import pallas as pl
from jax.experimental.pallas import tpu as pltpu

_NEG_INF = -1e9
_VMEM_LIMIT = 64 * 1024 * 1024  # <= physical VMEM on v5e/v6e (128 MiB) and v7x (64 MiB)


def _layer_norm(y, gamma, beta, eps):
    mean = jnp.mean(y, axis=-1, keepdims=True)
    c = y - mean
    var = jnp.mean(c * c, axis=-1, keepdims=True)
    return gamma * (c * jax.lax.rsqrt(var + eps)) + beta


# -----------------------------------------------------------------------------------------
# Fused DecoderBlock kernel: one sequence per grid step.
# -----------------------------------------------------------------------------------------
def _decoder_block_kernel(ctx_ref, x_ref, bias_ref,
                          wq_ref, bq_ref, wk_ref, bk_ref, wv_ref, bv_ref,
                          wo_ref, bo_ref, w1_ref, b1_ref, w2_ref, b2_ref,
                          g1_ref, be1_ref, g3_ref, be3_ref,
                          out_ref,
                          qh_s, kh_s, vh_s, cat_s,
                          *, n_heads, d_feature, eps, scale, compute_dtype):
    H, Dh = n_heads, d_feature
    f32 = jnp.float32

    ctx = ctx_ref[0]                    # (T, d_model), bf16
    x_f32 = x_ref[0]                    # (T, d_model), f32 residual path
    x_c = x_f32.astype(compute_dtype)

    # ---- fused Q/K/V projections (1/sqrt(d_feature) folded into q) -------------------
    q = (jnp.dot(ctx, wq_ref[...], preferred_element_type=f32) + bq_ref[...]) * scale
    k = jnp.dot(x_c, wk_ref[...], preferred_element_type=f32) + bk_ref[...]
    v = jnp.dot(x_c, wv_ref[...], preferred_element_type=f32) + bv_ref[...]
    qc = q.astype(compute_dtype)
    kc = k.astype(compute_dtype)
    vc = v.astype(compute_dtype)

    # ---- head split via static lane-slice copies into (H, T, Dh) scratch -------------
    for h in range(H):
        sl = slice(h * Dh, (h + 1) * Dh)
        qh_s[h] = qc[:, sl]
        kh_s[h] = kc[:, sl]
        vh_s[h] = vc[:, sl]

    # ---- attention core: all heads batched in two einsums, f32 softmax ---------------
    s = jnp.einsum('hqd,hkd->hqk', qh_s[...], kh_s[...], preferred_element_type=f32)
    s = s + bias_ref[0]                                 # (T,T) additive mask, all heads
    s = s - jnp.max(s, axis=-1, keepdims=True)          # numerically stable softmax
    p = jnp.exp(s)
    p = p * pl.reciprocal(jnp.sum(p, axis=-1, keepdims=True), approx=True)
    o = jnp.einsum('hqk,hkd->hqd', p.astype(compute_dtype), vh_s[...],
                   preferred_element_type=f32)
    oc = o.astype(compute_dtype)

    # ---- head merge ("concat") via static lane-slice stores --------------------------
    for h in range(H):
        cat_s[:, h * Dh:(h + 1) * Dh] = oc[h]

    # ---- output projection + LayerNorm1 + residual (dropout == identity) -------------
    attn = jnp.dot(cat_s[...], wo_ref[...], preferred_element_type=f32) + bo_ref[...]
    x1 = x_f32 + _layer_norm(attn, g1_ref[...], be1_ref[...], eps)

    # ---- FFN (Linear -> ReLU -> Linear) + LayerNorm3 + residual -----------------------
    h1 = jnp.maximum(
        jnp.dot(x1.astype(compute_dtype), w1_ref[...], preferred_element_type=f32)
        + b1_ref[...], 0.0)
    pos = jnp.dot(h1.astype(compute_dtype), w2_ref[...], preferred_element_type=f32) \
        + b2_ref[...]
    out_ref[0] = (x1 + _layer_norm(pos, g3_ref[...], be3_ref[...], eps)).astype(out_ref.dtype)


def init_decoder_block_params(key, d_model, d_feature, d_ff, n_heads):
    """PyTorch-style uniform(+/- 1/sqrt(fan_in)) init; params stored f32, cast to bf16 at
    the kernel boundary."""
    ks = jax.random.split(key, 6)

    def linear(k, fan_in, fan_out):
        kw, kb = jax.random.split(k)
        bound = 1.0 / math.sqrt(fan_in)
        w = jax.random.uniform(kw, (fan_in, fan_out), jnp.float32, -bound, bound)
        b = jax.random.uniform(kb, (1, fan_out), jnp.float32, -bound, bound)
        return w, b

    d_qkv = n_heads * d_feature
    wq, bq = linear(ks[0], d_model, d_qkv)
    wk, bk = linear(ks[1], d_model, d_qkv)
    wv, bv = linear(ks[2], d_model, d_qkv)
    wo, bo = linear(ks[3], d_qkv, d_model)
    w1, b1 = linear(ks[4], d_model, d_ff)
    w2, b2 = linear(ks[5], d_ff, d_model)
    return dict(
        wq=wq, bq=bq, wk=wk, bk=bk, wv=wv, bv=bv, wo=wo, bo=bo,
        w1=w1, b1=b1, w2=w2, b2=b2,
        g1=jnp.ones((1, d_model), jnp.float32), be1=jnp.zeros((1, d_model), jnp.float32),
        g3=jnp.ones((1, d_model), jnp.float32), be3=jnp.zeros((1, d_model), jnp.float32),
    )


def decoder_block(context, x, params, tgt_mask=None, *, n_heads, d_feature, eps=1e-6,
                  compute_dtype=jnp.bfloat16):
    """DecoderBlock forward (inference). enc_out / src_mask are unused by the module's
    forward and therefore not taken here."""
    B, T, d_model = x.shape
    H, Dh = n_heads, d_feature
    d_qkv = H * Dh
    f32 = jnp.float32
    cast = lambda a: a.astype(compute_dtype)

    ctx = cast(context)
    x_f = x.astype(f32)

    if tgt_mask is None:
        bias = jnp.zeros((1, T, T), f32)
    else:
        m = jnp.asarray(tgt_mask, f32)
        if m.ndim == 2:
            m = m[None]
        bias = (1.0 - m) * _NEG_INF                    # additive bias, NOT (B,T,T)-broadcast
    bias_map = (lambda b: (b, 0, 0)) if bias.shape[0] == B else (lambda b: (0, 0, 0))

    weights = (cast(params["wq"]), params["bq"].astype(f32),
               cast(params["wk"]), params["bk"].astype(f32),
               cast(params["wv"]), params["bv"].astype(f32),
               cast(params["wo"]), params["bo"].astype(f32),
               cast(params["w1"]), params["b1"].astype(f32),
               cast(params["w2"]), params["b2"].astype(f32),
               params["g1"].astype(f32), params["be1"].astype(f32),
               params["g3"].astype(f32), params["be3"].astype(f32))

    def const_spec(arr):                               # weights: constant block index
        return pl.BlockSpec(arr.shape, lambda b, _n=arr.ndim: (0,) * _n)

    def seq_spec(cols):
        return pl.BlockSpec((1, T, cols), lambda b: (b, 0, 0))

    out = pl.pallas_call(
        functools.partial(_decoder_block_kernel, n_heads=H, d_feature=Dh, eps=eps,
                          scale=1.0 / math.sqrt(Dh), compute_dtype=compute_dtype),
        grid=(B,),
        in_specs=[seq_spec(d_model), seq_spec(d_model),
                  pl.BlockSpec((1, T, T), bias_map)]
                 + [const_spec(w) for w in weights],
        out_specs=seq_spec(d_model),
        out_shape=jax.ShapeDtypeStruct((B, T, d_model), f32),
        scratch_shapes=[pltpu.VMEM((H, T, Dh), compute_dtype),
                        pltpu.VMEM((H, T, Dh), compute_dtype),
                        pltpu.VMEM((H, T, Dh), compute_dtype),
                        pltpu.VMEM((T, d_qkv), compute_dtype)],
        compiler_params=pltpu.CompilerParams(
            dimension_semantics=("parallel",),
            vmem_limit_bytes=_VMEM_LIMIT),
    )(ctx, x_f, bias, *weights)
    return out


def decoder_block_ref(context, x, params, tgt_mask=None, *, n_heads, d_feature, eps=1e-6,
                      compute_dtype=jnp.bfloat16):
    """Pure-JAX reference with the same bf16-matmul / f32-accumulate precision policy."""
    B, T, d_model = x.shape
    H, Dh = n_heads, d_feature
    f32 = jnp.float32
    c = lambda a: a.astype(compute_dtype)
    mm = lambda a, w: jnp.dot(c(a), c(w), preferred_element_type=f32)

    def ln(y, g, b):
        m = y.mean(-1, keepdims=True)
        v = ((y - m) ** 2).mean(-1, keepdims=True)
        return g * (y - m) / jnp.sqrt(v + eps) + b

    q = (mm(context, params["wq"]) + params["bq"]) * (1.0 / math.sqrt(Dh))
    k = mm(x, params["wk"]) + params["bk"]
    v = mm(x, params["wv"]) + params["bv"]
    split = lambda a: a.reshape(B, T, H, Dh).transpose(0, 2, 1, 3)
    s = jnp.einsum("bhqd,bhkd->bhqk", c(split(q)), c(split(k)),
                   preferred_element_type=f32)
    if tgt_mask is not None:
        m = jnp.asarray(tgt_mask, f32)
        if m.ndim == 2:
            m = m[None]
        s = jnp.where(m[:, None] > 0, s, _NEG_INF)
    p = jax.nn.softmax(s, axis=-1)
    o = jnp.einsum("bhqk,bhkd->bhqd", c(p), c(split(v)), preferred_element_type=f32)
    concat = o.transpose(0, 2, 1, 3).reshape(B, T, H * Dh)
    attn = mm(concat, params["wo"]) + params["bo"]
    x1 = x + ln(attn, params["g1"], params["be1"])
    h1 = jnp.maximum(mm(x1, params["w1"]) + params["b1"], 0.0)
    pos = mm(h1, params["w2"]) + params["b2"]
    return x1 + ln(pos, params["g3"], params["be3"])


if __name__ == "__main__":
    # small shapes consistent with the module's signature
    B, T = 2, 8
    d_model, d_feature, d_ff, n_heads = 32, 16, 64, 4

    key = jax.random.PRNGKey(0)
    k_ctx, k_x, k_enc, k_par = jax.random.split(key, 4)
    context = jax.random.normal(k_ctx, (B, T, d_model), jnp.float32)
    x = jax.random.normal(k_x, (B, T, d_model), jnp.float32)
    enc_out = jax.random.normal(k_enc, (B, T, d_model), jnp.float32)  # unused (as in reference forward)
    tgt_mask = jnp.tril(jnp.ones((T, T), jnp.float32))                # causal decoder mask

    params = init_decoder_block_params(k_par, d_model, d_feature, d_ff, n_heads)

    fwd = jax.jit(functools.partial(decoder_block, n_heads=n_heads, d_feature=d_feature))

    out = jax.block_until_ready(fwd(context, x, params, tgt_mask))
    ref = decoder_block_ref(context, x, params, tgt_mask,
                            n_heads=n_heads, d_feature=d_feature)
    assert out.shape == (B, T, d_model)
    assert jnp.allclose(out, ref, atol=3e-2, rtol=3e-2), "mismatch vs reference (masked)"

    out_nm = jax.block_until_ready(fwd(context, x, params, None))
    ref_nm = decoder_block_ref(context, x, params, None,
                               n_heads=n_heads, d_feature=d_feature)
    assert jnp.allclose(out_nm, ref_nm, atol=3e-2, rtol=3e-2), "mismatch vs reference (no mask)"

    print("KERNEL_OK")
</pallas_src>

<mosaic_0001>
module attributes {stable_mosaic.version = 11 : i64} {
  func.func @_decoder_block_kernel(%arg0: i32, %arg1: memref<1x8x32xbf16, #tpu.memory_space<vmem>>, %arg2: memref<1x8x32xf32, #tpu.memory_space<vmem>>, %arg3: memref<1x8x8xf32, #tpu.memory_space<vmem>>, %arg4: memref<32x64xbf16, #tpu.memory_space<vmem>>, %arg5: memref<1x64xf32, #tpu.memory_space<vmem>>, %arg6: memref<32x64xbf16, #tpu.memory_space<vmem>>, %arg7: memref<1x64xf32, #tpu.memory_space<vmem>>, %arg8: memref<32x64xbf16, #tpu.memory_space<vmem>>, %arg9: memref<1x64xf32, #tpu.memory_space<vmem>>, %arg10: memref<64x32xbf16, #tpu.memory_space<vmem>>, %arg11: memref<1x32xf32, #tpu.memory_space<vmem>>, %arg12: memref<32x64xbf16, #tpu.memory_space<vmem>>, %arg13: memref<1x64xf32, #tpu.memory_space<vmem>>, %arg14: memref<64x32xbf16, #tpu.memory_space<vmem>>, %arg15: memref<1x32xf32, #tpu.memory_space<vmem>>, %arg16: memref<1x32xf32, #tpu.memory_space<vmem>>, %arg17: memref<1x32xf32, #tpu.memory_space<vmem>>, %arg18: memref<1x32xf32, #tpu.memory_space<vmem>>, %arg19: memref<1x32xf32, #tpu.memory_space<vmem>>, %arg20: memref<1x8x32xf32, #tpu.memory_space<vmem>>, %arg21: memref<4x8x16xbf16, #tpu.memory_space<vmem>>, %arg22: memref<4x8x16xbf16, #tpu.memory_space<vmem>>, %arg23: memref<4x8x16xbf16, #tpu.memory_space<vmem>>, %arg24: memref<8x64xbf16, #tpu.memory_space<vmem>>) attributes {dimension_semantics = [#tpu.dimension_semantics<parallel>], iteration_bounds = array<i64: 2>, scalar_prefetch = 0 : i64, scratch_operands = 4 : i64, tpu.core_type = #tpu.core_type<tc>, window_params = [{transform_indices = @transform_0, window_bounds = array<i64: 1, 8, 32>}, {transform_indices = @transform_1, window_bounds = array<i64: 1, 8, 32>}, {pipeline_mode = #tpu.pipeline_mode<synchronous>, transform_indices = @transform_2, window_bounds = array<i64: 1, 8, 8>}, {pipeline_mode = #tpu.pipeline_mode<synchronous>, transform_indices = @transform_3, window_bounds = array<i64: 32, 64>}, {pipeline_mode = #tpu.pipeline_mode<synchronous>, transform_indices = @transform_4, window_bounds = array<i64: 1, 64>}, {pipeline_mode = #tpu.pipeline_mode<synchronous>, transform_indices = @transform_5, window_bounds = array<i64: 32, 64>}, {pipeline_mode = #tpu.pipeline_mode<synchronous>, transform_indices = @transform_6, window_bounds = array<i64: 1, 64>}, {pipeline_mode = #tpu.pipeline_mode<synchronous>, transform_indices = @transform_7, window_bounds = array<i64: 32, 64>}, {pipeline_mode = #tpu.pipeline_mode<synchronous>, transform_indices = @transform_8, window_bounds = array<i64: 1, 64>}, {pipeline_mode = #tpu.pipeline_mode<synchronous>, transform_indices = @transform_9, window_bounds = array<i64: 64, 32>}, {pipeline_mode = #tpu.pipeline_mode<synchronous>, transform_indices = @transform_10, window_bounds = array<i64: 1, 32>}, {pipeline_mode = #tpu.pipeline_mode<synchronous>, transform_indices = @transform_11, window_bounds = array<i64: 32, 64>}, {pipeline_mode = #tpu.pipeline_mode<synchronous>, transform_indices = @transform_12, window_bounds = array<i64: 1, 64>}, {pipeline_mode = #tpu.pipeline_mode<synchronous>, transform_indices = @transform_13, window_bounds = array<i64: 64, 32>}, {pipeline_mode = #tpu.pipeline_mode<synchronous>, transform_indices = @transform_14, window_bounds = array<i64: 1, 32>}, {pipeline_mode = #tpu.pipeline_mode<synchronous>, transform_indices = @transform_15, window_bounds = array<i64: 1, 32>}, {pipeline_mode = #tpu.pipeline_mode<synchronous>, transform_indices = @transform_16, window_bounds = array<i64: 1, 32>}, {pipeline_mode = #tpu.pipeline_mode<synchronous>, transform_indices = @transform_17, window_bounds = array<i64: 1, 32>}, {pipeline_mode = #tpu.pipeline_mode<synchronous>, transform_indices = @transform_18, window_bounds = array<i64: 1, 32>}, {transform_indices = @transform_19, window_bounds = array<i64: 1, 8, 32>}]} {
    %c0 = arith.constant 0 : index
    %c0_0 = arith.constant 0 : index
    %c0_1 = arith.constant 0 : index
    %0 = vector.load %arg1[%c0, %c0_0, %c0_1] : memref<1x8x32xbf16, #tpu.memory_space<vmem>>, vector<1x8x32xbf16>
    %1 = vector.shape_cast %0 : vector<1x8x32xbf16> to vector<8x32xbf16>
    %c0_2 = arith.constant 0 : index
    %c0_3 = arith.constant 0 : index
    %c0_4 = arith.constant 0 : index
    %2 = vector.load %arg2[%c0_2, %c0_3, %c0_4] : memref<1x8x32xf32, #tpu.memory_space<vmem>>, vector<1x8x32xf32>
    %3 = vector.shape_cast %2 : vector<1x8x32xf32> to vector<8x32xf32>
    %4 = arith.truncf %3 : vector<8x32xf32> to vector<8x32xbf16>
    %c0_5 = arith.constant 0 : index
    %c0_6 = arith.constant 0 : index
    %5 = vector.load %arg4[%c0_5, %c0_6] : memref<32x64xbf16, #tpu.memory_space<vmem>>, vector<32x64xbf16>
    %cst = arith.constant dense<0.000000e+00> : vector<8x64xf32>
    %6 = tpu.matmul %1, %5, %cst {dimension_numbers = #tpu.dot_dimension_numbers<[1], [0], [0], [1], [0, 0, 1, 1], [], []>} : vector<8x32xbf16>, vector<32x64xbf16>, vector<8x64xf32> -> vector<8x64xf32>
    %c0_7 = arith.constant 0 : index
    %c0_8 = arith.constant 0 : index
    %7 = vector.load %arg5[%c0_7, %c0_8] : memref<1x64xf32, #tpu.memory_space<vmem>>, vector<1x64xf32>
    %8 = vector.broadcast %7 : vector<1x64xf32> to vector<8x64xf32>
    %9 = arith.addf %6, %8 : vector<8x64xf32>
    %cst_9 = arith.constant 2.500000e-01 : f32
    %10 = vector.broadcast %cst_9 : f32 to vector<8x64xf32>
    %11 = arith.mulf %9, %10 : vector<8x64xf32>
    %c0_10 = arith.constant 0 : index
    %c0_11 = arith.constant 0 : index
    %12 = vector.load %arg6[%c0_10, %c0_11] : memref<32x64xbf16, #tpu.memory_space<vmem>>, vector<32x64xbf16>
    %cst_12 = arith.constant dense<0.000000e+00> : vector<8x64xf32>
    %13 = tpu.matmul %4, %12, %cst_12 {dimension_numbers = #tpu.dot_dimension_numbers<[1], [0], [0], [1], [0, 0, 1, 1], [], []>} : vector<8x32xbf16>, vector<32x64xbf16>, vector<8x64xf32> -> vector<8x64xf32>
    %c0_13 = arith.constant 0 : index
    %c0_14 = arith.constant 0 : index
    %14 = vector.load %arg7[%c0_13, %c0_14] : memref<1x64xf32, #tpu.memory_space<vmem>>, vector<1x64xf32>
    %15 = vector.broadcast %14 : vector<1x64xf32> to vector<8x64xf32>
    %16 = arith.addf %13, %15 : vector<8x64xf32>
    %c0_15 = arith.constant 0 : index
    %c0_16 = arith.constant 0 : index
    %17 = vector.load %arg8[%c0_15, %c0_16] : memref<32x64xbf16, #tpu.memory_space<vmem>>, vector<32x64xbf16>
    %cst_17 = arith.constant dense<0.000000e+00> : vector<8x64xf32>
    %18 = tpu.matmul %4, %17, %cst_17 {dimension_numbers = #tpu.dot_dimension_numbers<[1], [0], [0], [1], [0, 0, 1, 1], [], []>} : vector<8x32xbf16>, vector<32x64xbf16>, vector<8x64xf32> -> vector<8x64xf32>
    %c0_18 = arith.constant 0 : index
    %c0_19 = arith.constant 0 : index
    %19 = vector.load %arg9[%c0_18, %c0_19] : memref<1x64xf32, #tpu.memory_space<vmem>>, vector<1x64xf32>
    %20 = vector.broadcast %19 : vector<1x64xf32> to vector<8x64xf32>
    %21 = arith.addf %18, %20 : vector<8x64xf32>
    %22 = arith.truncf %11 : vector<8x64xf32> to vector<8x64xbf16>
    %23 = arith.truncf %16 : vector<8x64xf32> to vector<8x64xbf16>
    %24 = arith.truncf %21 : vector<8x64xf32> to vector<8x64xbf16>
    %25 = vector.extract_strided_slice %22 {offsets = [0, 0], sizes = [8, 16], strides = [1, 1]} : vector<8x64xbf16> to vector<8x16xbf16>
    %c0_20 = arith.constant 0 : index
    %c0_21 = arith.constant 0 : index
    %c0_22 = arith.constant 0 : index
    %26 = vector.load %arg21[%c0_20, %c0_21, %c0_22] : memref<4x8x16xbf16, #tpu.memory_space<vmem>>, vector<1x8x16xbf16>
    %27 = vector.shape_cast %26 : vector<1x8x16xbf16> to vector<8x16xbf16>
    %28 = vector.shape_cast %25 : vector<8x16xbf16> to vector<1x8x16xbf16>
    tpu.vector_store %arg21[%c0_20, %c0_21, %c0_22], %28 {strides = array<i32>} : memref<4x8x16xbf16, #tpu.memory_space<vmem>>, vector<1x8x16xbf16>,
    %29 = vector.extract_strided_slice %23 {offsets = [0, 0], sizes = [8, 16], strides = [1, 1]} : vector<8x64xbf16> to vector<8x16xbf16>
    %c0_23 = arith.constant 0 : index
    %c0_24 = arith.constant 0 : index
    %c0_25 = arith.constant 0 : index
    %30 = vector.load %arg22[%c0_23, %c0_24, %c0_25] : memref<4x8x16xbf16, #tpu.memory_space<vmem>>, vector<1x8x16xbf16>
    %31 = vector.shape_cast %30 : vector<1x8x16xbf16> to vector<8x16xbf16>
    %32 = vector.shape_cast %29 : vector<8x16xbf16> to vector<1x8x16xbf16>
    tpu.vector_store %arg22[%c0_23, %c0_24, %c0_25], %32 {strides = array<i32>} : memref<4x8x16xbf16, #tpu.memory_space<vmem>>, vector<1x8x16xbf16>,
    %33 = vector.extract_strided_slice %24 {offsets = [0, 0], sizes = [8, 16], strides = [1, 1]} : vector<8x64xbf16> to vector<8x16xbf16>
    %c0_26 = arith.constant 0 : index
    %c0_27 = arith.constant 0 : index
    %c0_28 = arith.constant 0 : index
    %34 = vector.load %arg23[%c0_26, %c0_27, %c0_28] : memref<4x8x16xbf16, #tpu.memory_space<vmem>>, vector<1x8x16xbf16>
    %35 = vector.shape_cast %34 : vector<1x8x16xbf16> to vector<8x16xbf16>
    %36 = vector.shape_cast %33 : vector<8x16xbf16> to vector<1x8x16xbf16>
    tpu.vector_store %arg23[%c0_26, %c0_27, %c0_28], %36 {strides = array<i32>} : memref<4x8x16xbf16, #tpu.memory_space<vmem>>, vector<1x8x16xbf16>,
    %37 = vector.extract_strided_slice %22 {offsets = [0, 16], sizes = [8, 16], strides = [1, 1]} : vector<8x64xbf16> to vector<8x16xbf16>
    %c1 = arith.constant 1 : index
    %c0_29 = arith.constant 0 : index
    %c0_30 = arith.constant 0 : index
    %38 = vector.load %arg21[%c1, %c0_29, %c0_30] : memref<4x8x16xbf16, #tpu.memory_space<vmem>>, vector<1x8x16xbf16>
    %39 = vector.shape_cast %38 : vector<1x8x16xbf16> to vector<8x16xbf16>
    %40 = vector.shape_cast %37 : vector<8x16xbf16> to vector<1x8x16xbf16>
    tpu.vector_store %arg21[%c1, %c0_29, %c0_30], %40 {strides = array<i32>} : memref<4x8x16xbf16, #tpu.memory_space<vmem>>, vector<1x8x16xbf16>,
    %41 = vector.extract_strided_slice %23 {offsets = [0, 16], sizes = [8, 16], strides = [1, 1]} : vector<8x64xbf16> to vector<8x16xbf16>
    %c1_31 = arith.constant 1 : index
    %c0_32 = arith.constant 0 : index
    %c0_33 = arith.constant 0 : index
    %42 = vector.load %arg22[%c1_31, %c0_32, %c0_33] : memref<4x8x16xbf16, #tpu.memory_space<vmem>>, vector<1x8x16xbf16>
    %43 = vector.shape_cast %42 : vector<1x8x16xbf16> to vector<8x16xbf16>
    %44 = vector.shape_cast %41 : vector<8x16xbf16> to vector<1x8x16xbf16>
    tpu.vector_store %arg22[%c1_31, %c0_32, %c0_33], %44 {strides = array<i32>} : memref<4x8x16xbf16, #tpu.memory_space<vmem>>, vector<1x8x16xbf16>,
    %45 = vector.extract_strided_slice %24 {offsets = [0, 16], sizes = [8, 16], strides = [1, 1]} : vector<8x64xbf16> to vector<8x16xbf16>
    %c1_34 = arith.constant 1 : index
    %c0_35 = arith.constant 0 : index
    %c0_36 = arith.constant 0 : index
    %46 = vector.load %arg23[%c1_34, %c0_35, %c0_36] : memref<4x8x16xbf16, #tpu.memory_space<vmem>>, vector<1x8x16xbf16>
    %47 = vector.shape_cast %46 : vector<1x8x16xbf16> to vector<8x16xbf16>
    %48 = vector.shape_cast %45 : vector<8x16xbf16> to vector<1x8x16xbf16>
    tpu.vector_store %arg23[%c1_34, %c0_35, %c0_36], %48 {strides = array<i32>} : memref<4x8x16xbf16, #tpu.memory_space<vmem>>, vector<1x8x16xbf16>,
    %49 = vector.extract_strided_slice %22 {offsets = [0, 32], sizes = [8, 16], strides = [1, 1]} : vector<8x64xbf16> to vector<8x16xbf16>
    %c2 = arith.constant 2 : index
    %c0_37 = arith.constant 0 : index
    %c0_38 = arith.constant 0 : index
    %50 = vector.load %arg21[%c2, %c0_37, %c0_38] : memref<4x8x16xbf16, #tpu.memory_space<vmem>>, vector<1x8x16xbf16>
    %51 = vector.shape_cast %50 : vector<1x8x16xbf16> to vector<8x16xbf16>
    %52 = vector.shape_cast %49 : vector<8x16xbf16> to vector<1x8x16xbf16>
    tpu.vector_store %arg21[%c2, %c0_37, %c0_38], %52 {strides = array<i32>} : memref<4x8x16xbf16, #tpu.memory_space<vmem>>, vector<1x8x16xbf16>,
    %53 = vector.extract_strided_slice %23 {offsets = [0, 32], sizes = [8, 16], strides = [1, 1]} : vector<8x64xbf16> to vector<8x16xbf16>
    %c2_39 = arith.constant 2 : index
    %c0_40 = arith.constant 0 : index
    %c0_41 = arith.constant 0 : index
    %54 = vector.load %arg22[%c2_39, %c0_40, %c0_41] : memref<4x8x16xbf16, #tpu.memory_space<vmem>>, vector<1x8x16xbf16>
    %55 = vector.shape_cast %54 : vector<1x8x16xbf16> to vector<8x16xbf16>
    %56 = vector.shape_cast %53 : vector<8x16xbf16> to vector<1x8x16xbf16>
    tpu.vector_store %arg22[%c2_39, %c0_40, %c0_41], %56 {strides = array<i32>} : memref<4x8x16xbf16, #tpu.memory_space<vmem>>, vector<1x8x16xbf16>,
    %57 = vector.extract_strided_slice %24 {offsets = [0, 32], sizes = [8, 16], strides = [1, 1]} : vector<8x64xbf16> to vector<8x16xbf16>
    %c2_42 = arith.constant 2 : index
    %c0_43 = arith.constant 0 : index
    %c0_44 = arith.constant 0 : index
    %58 = vector.load %arg23[%c2_42, %c0_43, %c0_44] : memref<4x8x16xbf16, #tpu.memory_space<vmem>>, vector<1x8x16xbf16>
    %59 = vector.shape_cast %58 : vector<1x8x16xbf16> to vector<8x16xbf16>
    %60 = vector.shape_cast %57 : vector<8x16xbf16> to vector<1x8x16xbf16>
    tpu.vector_store %arg23[%c2_42, %c0_43, %c0_44], %60 {strides = array<i32>} : memref<4x8x16xbf16, #tpu.memory_space<vmem>>, vector<1x8x16xbf16>,
    %61 = vector.extract_strided_slice %22 {offsets = [0, 48], sizes = [8, 16], strides = [1, 1]} : vector<8x64xbf16> to vector<8x16xbf16>
    %c3 = arith.constant 3 : index
    %c0_45 = arith.constant 0 : index
    %c0_46 = arith.constant 0 : index
    %62 = vector.load %arg21[%c3, %c0_45, %c0_46] : memref<4x8x16xbf16, #tpu.memory_space<vmem>>, vector<1x8x16xbf16>
    %63 = vector.shape_cast %62 : vector<1x8x16xbf16> to vector<8x16xbf16>
    %64 = vector.shape_cast %61 : vector<8x16xbf16> to vector<1x8x16xbf16>
    tpu.vector_store %arg21[%c3, %c0_45, %c0_46], %64 {strides = array<i32>} : memref<4x8x16xbf16, #tpu.memory_space<vmem>>, vector<1x8x16xbf16>,
    %65 = vector.extract_strided_slice %23 {offsets = [0, 48], sizes = [8, 16], strides = [1, 1]} : vector<8x64xbf16> to vector<8x16xbf16>
    %c3_47 = arith.constant 3 : index
    %c0_48 = arith.constant 0 : index
    %c0_49 = arith.constant 0 : index
    %66 = vector.load %arg22[%c3_47, %c0_48, %c0_49] : memref<4x8x16xbf16, #tpu.memory_space<vmem>>, vector<1x8x16xbf16>
    %67 = vector.shape_cast %66 : vector<1x8x16xbf16> to vector<8x16xbf16>
    %68 = vector.shape_cast %65 : vector<8x16xbf16> to vector<1x8x16xbf16>
    tpu.vector_store %arg22[%c3_47, %c0_48, %c0_49], %68 {strides = array<i32>} : memref<4x8x16xbf16, #tpu.memory_space<vmem>>, vector<1x8x16xbf16>,
    %69 = vector.extract_strided_slice %24 {offsets = [0, 48], sizes = [8, 16], strides = [1, 1]} : vector<8x64xbf16> to vector<8x16xbf16>
    %c3_50 = arith.constant 3 : index
    %c0_51 = arith.constant 0 : index
    %c0_52 = arith.constant 0 : index
    %70 = vector.load %arg23[%c3_50, %c0_51, %c0_52] : memref<4x8x16xbf16, #tpu.memory_space<vmem>>, vector<1x8x16xbf16>
    %71 = vector.shape_cast %70 : vector<1x8x16xbf16> to vector<8x16xbf16>
    %72 = vector.shape_cast %69 : vector<8x16xbf16> to vector<1x8x16xbf16>
    tpu.vector_store %arg23[%c3_50, %c0_51, %c0_52], %72 {strides = array<i32>} : memref<4x8x16xbf16, #tpu.memory_space<vmem>>, vector<1x8x16xbf16>,
    %c0_53 = arith.constant 0 : index
    %c0_54 = arith.constant 0 : index
    %c0_55 = arith.constant 0 : index
    %73 = vector.load %arg21[%c0_53, %c0_54, %c0_55] : memref<4x8x16xbf16, #tpu.memory_space<vmem>>, vector<4x8x16xbf16>
    %c0_56 = arith.constant 0 : index
    %c0_57 = arith.constant 0 : index
    %c0_58 = arith.constant 0 : index
    %74 = vector.load %arg22[%c0_56, %c0_57, %c0_58] : memref<4x8x16xbf16, #tpu.memory_space<vmem>>, vector<4x8x16xbf16>
    "tpu.trace_start"() <{level = 10 : i32, message = "hqd,hkd->hqk"}> : () -> ()
    %cst_59 = arith.constant dense<0.000000e+00> : vector<4x8x8xf32>
    %75 = tpu.matmul %73, %74, %cst_59 {dimension_numbers = #tpu.dot_dimension_numbers<[2], [2], [1], [1], [0, 0, 0, 1, 1, 1], [0], [0]>} : vector<4x8x16xbf16>, vector<4x8x16xbf16>, vector<4x8x8xf32> -> vector<4x8x8xf32>
    "tpu.trace_stop"() : () -> ()
    %c0_60 = arith.constant 0 : index
    %c0_61 = arith.constant 0 : index
    %c0_62 = arith.constant 0 : index
    %76 = vector.load %arg3[%c0_60, %c0_61, %c0_62] : memref<1x8x8xf32, #tpu.memory_space<vmem>>, vector<1x8x8xf32>
    %77 = vector.shape_cast %76 : vector<1x8x8xf32> to vector<8x8xf32>
    %78 = vector.shape_cast %77 : vector<8x8xf32> to vector<1x8x8xf32>
    %79 = vector.broadcast %78 : vector<1x8x8xf32> to vector<4x8x8xf32>
    %80 = arith.addf %75, %79 : vector<4x8x8xf32>
    %cst_63 = arith.constant dense<0xFF800000> : vector<4x8xf32>
    %81 = vector.multi_reduction <maximumf>, %80, %cst_63 [2] : vector<4x8x8xf32> to vector<4x8xf32>
    %82 = vector.shape_cast %81 : vector<4x8xf32> to vector<4x8x1xf32>
    %83 = vector.broadcast %82 : vector<4x8x1xf32> to vector<4x8x8xf32>
    %84 = arith.subf %80, %83 : vector<4x8x8xf32>
    %85 = math.exp %84 : vector<4x8x8xf32>
    %cst_64 = arith.constant dense<0.000000e+00> : vector<4x8xf32>
    %86 = vector.multi_reduction <add>, %85, %cst_64 [2] : vector<4x8x8xf32> to vector<4x8xf32>
    %87 = vector.shape_cast %86 : vector<4x8xf32> to vector<4x8x1xf32>
    %88 = tpu.reciprocal %87 {approx = true} : vector<4x8x1xf32> -> vector<4x8x1xf32>
    %89 = vector.broadcast %88 : vector<4x8x1xf32> to vector<4x8x8xf32>
    %90 = arith.mulf %85, %89 : vector<4x8x8xf32>
    %91 = arith.truncf %90 : vector<4x8x8xf32> to vector<4x8x8xbf16>
    %c0_65 = arith.constant 0 : index
    %c0_66 = arith.constant 0 : index
    %c0_67 = arith.constant 0 : index
    %92 = vector.load %arg23[%c0_65, %c0_66, %c0_67] : memref<4x8x16xbf16, #tpu.memory_space<vmem>>, vector<4x8x16xbf16>
    "tpu.trace_start"() <{level = 10 : i32, message = "hqk,hkd->hqd"}> : () -> ()
    %cst_68 = arith.constant dense<0.000000e+00> : vector<4x8x16xf32>
    %93 = tpu.matmul %91, %92, %cst_68 {dimension_numbers = #tpu.dot_dimension_numbers<[2], [1], [1], [2], [0, 0, 0, 1, 1, 2], [0], [0]>} : vector<4x8x8xbf16>, vector<4x8x16xbf16>, vector<4x8x16xf32> -> vector<4x8x16xf32>
    "tpu.trace_stop"() : () -> ()
    %94 = arith.truncf %93 : vector<4x8x16xf32> to vector<4x8x16xbf16>
    %95 = vector.extract_strided_slice %94 {offsets = [0, 0, 0], sizes = [1, 8, 16], strides = [1, 1, 1]} : vector<4x8x16xbf16> to vector<1x8x16xbf16>
    %96 = vector.shape_cast %95 : vector<1x8x16xbf16> to vector<8x16xbf16>
    %c0_69 = arith.constant 0 : index
    %c0_70 = arith.constant 0 : index
    %97 = vector.load %arg24[%c0_69, %c0_70] : memref<8x64xbf16, #tpu.memory_space<vmem>>, vector<8x16xbf16>
    tpu.vector_store %arg24[%c0_69, %c0_70], %96 {strides = array<i32>} : memref<8x64xbf16, #tpu.memory_space<vmem>>, vector<8x16xbf16>,
    %98 = vector.extract_strided_slice %94 {offsets = [1, 0, 0], sizes = [1, 8, 16], strides = [1, 1, 1]} : vector<4x8x16xbf16> to vector<1x8x16xbf16>
    %99 = vector.shape_cast %98 : vector<1x8x16xbf16> to vector<8x16xbf16>
    %c0_71 = arith.constant 0 : index
    %c16 = arith.constant 16 : index
    %100 = vector.load %arg24[%c0_71, %c16] : memref<8x64xbf16, #tpu.memory_space<vmem>>, vector<8x16xbf16>
    tpu.vector_store %arg24[%c0_71, %c16], %99 {strides = array<i32>} : memref<8x64xbf16, #tpu.memory_space<vmem>>, vector<8x16xbf16>,
    %101 = vector.extract_strided_slice %94 {offsets = [2, 0, 0], sizes = [1, 8, 16], strides = [1, 1, 1]} : vector<4x8x16xbf16> to vector<1x8x16xbf16>
    %102 = vector.shape_cast %101 : vector<1x8x16xbf16> to vector<8x16xbf16>
    %c0_72 = arith.constant 0 : index
    %c32 = arith.constant 32 : index
    %103 = vector.load %arg24[%c0_72, %c32] : memref<8x64xbf16, #tpu.memory_space<vmem>>, vector<8x16xbf16>
    tpu.vector_store %arg24[%c0_72, %c32], %102 {strides = array<i32>} : memref<8x64xbf16, #tpu.memory_space<vmem>>, vector<8x16xbf16>,
    %104 = vector.extract_strided_slice %94 {offsets = [3, 0, 0], sizes = [1, 8, 16], strides = [1, 1, 1]} : vector<4x8x16xbf16> to vector<1x8x16xbf16>
    %105 = vector.shape_cast %104 : vector<1x8x16xbf16> to vector<8x16xbf16>
    %c0_73 = arith.constant 0 : index
    %c48 = arith.constant 48 : index
    %106 = vector.load %arg24[%c0_73, %c48] : memref<8x64xbf16, #tpu.memory_space<vmem>>, vector<8x16xbf16>
    tpu.vector_store %arg24[%c0_73, %c48], %105 {strides = array<i32>} : memref<8x64xbf16, #tpu.memory_space<vmem>>, vector<8x16xbf16>,
    %c0_74 = arith.constant 0 : index
    %c0_75 = arith.constant 0 : index
    %107 = vector.load %arg24[%c0_74, %c0_75] : memref<8x64xbf16, #tpu.memory_space<vmem>>, vector<8x64xbf16>
    %c0_76 = arith.constant 0 : index
    %c0_77 = arith.constant 0 : index
    %108 = vector.load %arg10[%c0_76, %c0_77] : memref<64x32xbf16, #tpu.memory_space<vmem>>, vector<64x32xbf16>
    %cst_78 = arith.constant dense<0.000000e+00> : vector<8x32xf32>
    %109 = tpu.matmul %107, %108, %cst_78 {dimension_numbers = #tpu.dot_dimension_numbers<[1], [0], [0], [1], [0, 0, 1, 1], [], []>} : vector<8x64xbf16>, vector<64x32xbf16>, vector<8x32xf32> -> vector<8x32xf32>
    %c0_79 = arith.constant 0 : index
    %c0_80 = arith.constant 0 : index
    %110 = vector.load %arg11[%c0_79, %c0_80] : memref<1x32xf32, #tpu.memory_space<vmem>>, vector<1x32xf32>
    %111 = vector.broadcast %110 : vector<1x32xf32> to vector<8x32xf32>
    %112 = arith.addf %109, %111 : vector<8x32xf32>
    %c0_81 = arith.constant 0 : index
    %c0_82 = arith.constant 0 : index
    %113 = vector.load %arg16[%c0_81, %c0_82] : memref<1x32xf32, #tpu.memory_space<vmem>>, vector<1x32xf32>
    %c0_83 = arith.constant 0 : index
    %c0_84 = arith.constant 0 : index
    %114 = vector.load %arg17[%c0_83, %c0_84] : memref<1x32xf32, #tpu.memory_space<vmem>>, vector<1x32xf32>
    %cst_85 = arith.constant dense<0.000000e+00> : vector<8xf32>
    %115 = vector.multi_reduction <add>, %112, %cst_85 [1] : vector<8x32xf32> to vector<8xf32>
    %116 = vector.shape_cast %115 : vector<8xf32> to vector<8x1xf32>
    %cst_86 = arith.constant 3.200000e+01 : f32
    %117 = vector.broadcast %cst_86 : f32 to vector<8x1xf32>
    %118 = arith.divf %116, %117 : vector<8x1xf32>
    %119 = vector.broadcast %118 : vector<8x1xf32> to vector<8x32xf32>
    %120 = arith.subf %112, %119 : vector<8x32xf32>
    %121 = arith.mulf %120, %120 : vector<8x32xf32>
    %cst_87 = arith.constant dense<0.000000e+00> : vector<8xf32>
    %122 = vector.multi_reduction <add>, %121, %cst_87 [1] : vector<8x32xf32> to vector<8xf32>
    %123 = vector.shape_cast %122 : vector<8xf32> to vector<8x1xf32>
    %cst_88 = arith.constant 3.200000e+01 : f32
    %124 = vector.broadcast %cst_88 : f32 to vector<8x1xf32>
    %125 = arith.divf %123, %124 : vector<8x1xf32>
    %cst_89 = arith.constant 9.99999997E-7 : f32
    %126 = vector.broadcast %cst_89 : f32 to vector<8x1xf32>
    %127 = arith.addf %125, %126 : vector<8x1xf32>
    %128 = math.rsqrt %127 : vector<8x1xf32>
    %129 = vector.broadcast %128 : vector<8x1xf32> to vector<8x32xf32>
    %130 = arith.mulf %120, %129 : vector<8x32xf32>
    %131 = vector.broadcast %113 : vector<1x32xf32> to vector<8x32xf32>
    %132 = arith.mulf %131, %130 : vector<8x32xf32>
    %133 = vector.broadcast %114 : vector<1x32xf32> to vector<8x32xf32>
    %134 = arith.addf %132, %133 : vector<8x32xf32>
    %135 = arith.addf %3, %134 : vector<8x32xf32>
    %136 = arith.truncf %135 : vector<8x32xf32> to vector<8x32xbf16>
    %c0_90 = arith.constant 0 : index
    %c0_91 = arith.constant 0 : index
    %137 = vector.load %arg12[%c0_90, %c0_91] : memref<32x64xbf16, #tpu.memory_space<vmem>>, vector<32x64xbf16>
    %cst_92 = arith.constant dense<0.000000e+00> : vector<8x64xf32>
    %138 = tpu.matmul %136, %137, %cst_92 {dimension_numbers = #tpu.dot_dimension_numbers<[1], [0], [0], [1], [0, 0, 1, 1], [], []>} : vector<8x32xbf16>, vector<32x64xbf16>, vector<8x64xf32> -> vector<8x64xf32>
    %c0_93 = arith.constant 0 : index
    %c0_94 = arith.constant 0 : index
    %139 = vector.load %arg13[%c0_93, %c0_94] : memref<1x64xf32, #tpu.memory_space<vmem>>, vector<1x64xf32>
    %140 = vector.broadcast %139 : vector<1x64xf32> to vector<8x64xf32>
    %141 = arith.addf %138, %140 : vector<8x64xf32>
    %cst_95 = arith.constant 0.000000e+00 : f32
    %142 = vector.broadcast %cst_95 : f32 to vector<8x64xf32>
    %143 = arith.maximumf %141, %142 : vector<8x64xf32>
    %144 = arith.truncf %143 : vector<8x64xf32> to vector<8x64xbf16>
    %c0_96 = arith.constant 0 : index
    %c0_97 = arith.constant 0 : index
    %145 = vector.load %arg14[%c0_96, %c0_97] : memref<64x32xbf16, #tpu.memory_space<vmem>>, vector<64x32xbf16>
    %cst_98 = arith.constant dense<0.000000e+00> : vector<8x32xf32>
    %146 = tpu.matmul %144, %145, %cst_98 {dimension_numbers = #tpu.dot_dimension_numbers<[1], [0], [0], [1], [0, 0, 1, 1], [], []>} : vector<8x64xbf16>, vector<64x32xbf16>, vector<8x32xf32> -> vector<8x32xf32>
    %c0_99 = arith.constant 0 : index
    %c0_100 = arith.constant 0 : index
    %147 = vector.load %arg15[%c0_99, %c0_100] : memref<1x32xf32, #tpu.memory_space<vmem>>, vector<1x32xf32>
    %148 = vector.broadcast %147 : vector<1x32xf32> to vector<8x32xf32>
    %149 = arith.addf %146, %148 : vector<8x32xf32>
    %c0_101 = arith.constant 0 : index
    %c0_102 = arith.constant 0 : index
    %150 = vector.load %arg18[%c0_101, %c0_102] : memref<1x32xf32, #tpu.memory_space<vmem>>, vector<1x32xf32>
    %c0_103 = arith.constant 0 : index
    %c0_104 = arith.constant 0 : index
    %151 = vector.load %arg19[%c0_103, %c0_104] : memref<1x32xf32, #tpu.memory_space<vmem>>, vector<1x32xf32>
    %cst_105 = arith.constant dense<0.000000e+00> : vector<8xf32>
    %152 = vector.multi_reduction <add>, %149, %cst_105 [1] : vector<8x32xf32> to vector<8xf32>
    %153 = vector.shape_cast %152 : vector<8xf32> to vector<8x1xf32>
    %cst_106 = arith.constant 3.200000e+01 : f32
    %154 = vector.broadcast %cst_106 : f32 to vector<8x1xf32>
    %155 = arith.divf %153, %154 : vector<8x1xf32>
    %156 = vector.broadcast %155 : vector<8x1xf32> to vector<8x32xf32>
    %157 = arith.subf %149, %156 : vector<8x32xf32>
    %158 = arith.mulf %157, %157 : vector<8x32xf32>
    %cst_107 = arith.constant dense<0.000000e+00> : vector<8xf32>
    %159 = vector.multi_reduction <add>, %158, %cst_107 [1] : vector<8x32xf32> to vector<8xf32>
    %160 = vector.shape_cast %159 : vector<8xf32> to vector<8x1xf32>
    %cst_108 = arith.constant 3.200000e+01 : f32
    %161 = vector.broadcast %cst_108 : f32 to vector<8x1xf32>
    %162 = arith.divf %160, %161 : vector<8x1xf32>
    %cst_109 = arith.constant 9.99999997E-7 : f32
    %163 = vector.broadcast %cst_109 : f32 to vector<8x1xf32>
    %164 = arith.addf %162, %163 : vector<8x1xf32>
    %165 = math.rsqrt %164 : vector<8x1xf32>
    %166 = vector.broadcast %165 : vector<8x1xf32> to vector<8x32xf32>
    %167 = arith.mulf %157, %166 : vector<8x32xf32>
    %168 = vector.broadcast %150 : vector<1x32xf32> to vector<8x32xf32>
    %169 = arith.mulf %168, %167 : vector<8x32xf32>
    %170 = vector.broadcast %151 : vector<1x32xf32> to vector<8x32xf32>
    %171 = arith.addf %169, %170 : vector<8x32xf32>
    %172 = arith.addf %135, %171 : vector<8x32xf32>
    %c0_110 = arith.constant 0 : index
    %c0_111 = arith.constant 0 : index
    %c0_112 = arith.constant 0 : index
    %173 = vector.load %arg20[%c0_110, %c0_111, %c0_112] : memref<1x8x32xf32, #tpu.memory_space<vmem>>, vector<1x8x32xf32>
    %174 = vector.shape_cast %173 : vector<1x8x32xf32> to vector<8x32xf32>
    %175 = vector.shape_cast %172 : vector<8x32xf32> to vector<1x8x32xf32>
    tpu.vector_store %arg20[%c0_110, %c0_111, %c0_112], %175 {strides = array<i32>} : memref<1x8x32xf32, #tpu.memory_space<vmem>>, vector<1x8x32xf32>,
    return
  }
  func.func @transform_0(%arg0: i32) -> (i32, i32, i32) {
    %c0_i32 = arith.constant 0 : i32
    %c0_i32_0 = arith.constant 0 : i32
    %c0_i32_1 = arith.constant 0 : i32
    return %arg0, %c0_i32, %c0_i32_0 : i32, i32, i32
  }
  func.func @transform_1(%arg0: i32) -> (i32, i32, i32) {
    %c0_i32 = arith.constant 0 : i32
    %c0_i32_0 = arith.constant 0 : i32
    %c0_i32_1 = arith.constant 0 : i32
    return %arg0, %c0_i32, %c0_i32_0 : i32, i32, i32
  }
  func.func @transform_2(%arg0: i32) -> (i32, i32, i32) {
    %c0_i32 = arith.constant 0 : i32
    %c0_i32_0 = arith.constant 0 : i32
    %c0_i32_1 = arith.constant 0 : i32
    %c0_i32_2 = arith.constant 0 : i32
    return %c0_i32, %c0_i32_0, %c0_i32_1 : i32, i32, i32
  }
  func.func @transform_3(%arg0: i32) -> (i32, i32) {
    %c0_i32 = arith.constant 0 : i32
    %c0_i32_0 = arith.constant 0 : i32
    %c0_i32_1 = arith.constant 0 : i32
    return %c0_i32, %c0_i32_0 : i32, i32
  }
  func.func @transform_4(%arg0: i32) -> (i32, i32) {
    %c0_i32 = arith.constant 0 : i32
    %c0_i32_0 = arith.constant 0 : i32
    %c0_i32_1 = arith.constant 0 : i32
    return %c0_i32, %c0_i32_0 : i32, i32
  }
  func.func @transform_5(%arg0: i32) -> (i32, i32) {
    %c0_i32 = arith.constant 0 : i32
    %c0_i32_0 = arith.constant 0 : i32
    %c0_i32_1 = arith.constant 0 : i32
    return %c0_i32, %c0_i32_0 : i32, i32
  }
  func.func @transform_6(%arg0: i32) -> (i32, i32) {
    %c0_i32 = arith.constant 0 : i32
    %c0_i32_0 = arith.constant 0 : i32
    %c0_i32_1 = arith.constant 0 : i32
    return %c0_i32, %c0_i32_0 : i32, i32
  }
  func.func @transform_7(%arg0: i32) -> (i32, i32) {
    %c0_i32 = arith.constant 0 : i32
    %c0_i32_0 = arith.constant 0 : i32
    %c0_i32_1 = arith.constant 0 : i32
    return %c0_i32, %c0_i32_0 : i32, i32
  }
  func.func @transform_8(%arg0: i32) -> (i32, i32) {
    %c0_i32 = arith.constant 0 : i32
    %c0_i32_0 = arith.constant 0 : i32
    %c0_i32_1 = arith.constant 0 : i32
    return %c0_i32, %c0_i32_0 : i32, i32
  }
  func.func @transform_9(%arg0: i32) -> (i32, i32) {
    %c0_i32 = arith.constant 0 : i32
    %c0_i32_0 = arith.constant 0 : i32
    %c0_i32_1 = arith.constant 0 : i32
    return %c0_i32, %c0_i32_0 : i32, i32
  }
  func.func @transform_10(%arg0: i32) -> (i32, i32) {
    %c0_i32 = arith.constant 0 : i32
    %c0_i32_0 = arith.constant 0 : i32
    %c0_i32_1 = arith.constant 0 : i32
    return %c0_i32, %c0_i32_0 : i32, i32
  }
  func.func @transform_11(%arg0: i32) -> (i32, i32) {
    %c0_i32 = arith.constant 0 : i32
    %c0_i32_0 = arith.constant 0 : i32
    %c0_i32_1 = arith.constant 0 : i32
    return %c0_i32, %c0_i32_0 : i32, i32
  }
  func.func @transform_12(%arg0: i32) -> (i32, i32) {
    %c0_i32 = arith.constant 0 : i32
    %c0_i32_0 = arith.constant 0 : i32
    %c0_i32_1 = arith.constant 0 : i32
    return %c0_i32, %c0_i32_0 : i32, i32
  }
  func.func @transform_13(%arg0: i32) -> (i32, i32) {
    %c0_i32 = arith.constant 0 : i32
    %c0_i32_0 = arith.constant 0 : i32
    %c0_i32_1 = arith.constant 0 : i32
    return %c0_i32, %c0_i32_0 : i32, i32
  }
  func.func @transform_14(%arg0: i32) -> (i32, i32) {
    %c0_i32 = arith.constant 0 : i32
    %c0_i32_0 = arith.constant 0 : i32
    %c0_i32_1 = arith.constant 0 : i32
    return %c0_i32, %c0_i32_0 : i32, i32
  }
  func.func @transform_15(%arg0: i32) -> (i32, i32) {
    %c0_i32 = arith.constant 0 : i32
    %c0_i32_0 = arith.constant 0 : i32
    %c0_i32_1 = arith.constant 0 : i32
    return %c0_i32, %c0_i32_0 : i32, i32
  }
  func.func @transform_16(%arg0: i32) -> (i32, i32) {
    %c0_i32 = arith.constant 0 : i32
    %c0_i32_0 = arith.constant 0 : i32
    %c0_i32_1 = arith.constant 0 : i32
    return %c0_i32, %c0_i32_0 : i32, i32
  }
  func.func @transform_17(%arg0: i32) -> (i32, i32) {
    %c0_i32 = arith.constant 0 : i32
    %c0_i32_0 = arith.constant 0 : i32
    %c0_i32_1 = arith.constant 0 : i32
    return %c0_i32, %c0_i32_0 : i32, i32
  }
  func.func @transform_18(%arg0: i32) -> (i32, i32) {
    %c0_i32 = arith.constant 0 : i32
    %c0_i32_0 = arith.constant 0 : i32
    %c0_i32_1 = arith.constant 0 : i32
    return %c0_i32, %c0_i32_0 : i32, i32
  }
  func.func @transform_19(%arg0: i32) -> (i32, i32, i32) {
    %c0_i32 = arith.constant 0 : i32
    %c0_i32_0 = arith.constant 0 : i32
    %c0_i32_1 = arith.constant 0 : i32
    return %arg0, %c0_i32, %c0_i32_0 : i32, i32, i32
  }
}

</mosaic_0001>

<llo_original>
// kernel: decoder_block.1
$region0: #{decoder_block.1}
  #allocation0 [shape = 'u32[]', space=smem, size = 0x4, offset = 0x4, fixed_abs, tag = 'smem constant byte address 0x4 - core index']
  #allocation1 [shape = 'u32[72,128]{1,0:T(1,128)}', space=vmem, size = 0x9000, scoped, tag = 'internal scratch']
  #allocation2 [shape = 'bf16[4,8,16]{2,1,0:T(8,128)(2,1)}', space=vmem, size = 0x2000, scoped, tag = 'scratch operand']
  #allocation3 [shape = 'bf16[4,8,16]{2,1,0:T(8,128)(2,1)}', space=vmem, size = 0x2000, scoped, tag = 'scratch operand']
  #allocation4 [shape = 'bf16[4,8,16]{2,1,0:T(8,128)(2,1)}', space=vmem, size = 0x2000, scoped, tag = 'scratch operand']
  #allocation5 [shape = 'bf16[8,64]{1,0:T(8,128)(2,1)}', space=vmem, size = 0x800, scoped, tag = 'scratch operand']
  %s0 = inlined_call_operand.vmem [shape: bf16[2,8,32], index: 0, kind: input, shape index: {}]
  %s1 = inlined_call_operand.vmem [shape: f32[2,8,32], index: 1, kind: input, shape index: {}]
  %s2 = inlined_call_operand.vmem [shape: f32[1,8,8], index: 2, kind: input, shape index: {}]
  %s3 = inlined_call_operand.vmem [shape: bf16[32,64], index: 3, kind: input, shape index: {}]
  %s4 = inlined_call_operand.vmem [shape: f32[1,64], index: 4, kind: input, shape index: {}]
  %s5 = inlined_call_operand.vmem [shape: bf16[32,64], index: 5, kind: input, shape index: {}]
  %s6 = inlined_call_operand.vmem [shape: f32[1,64], index: 6, kind: input, shape index: {}]
  %s7 = inlined_call_operand.vmem [shape: bf16[32,64], index: 7, kind: input, shape index: {}]
  %s8 = inlined_call_operand.vmem [shape: f32[1,64], index: 8, kind: input, shape index: {}]
  %s9 = inlined_call_operand.vmem [shape: bf16[64,32], index: 9, kind: input, shape index: {}]
  %s10 = inlined_call_operand.vmem [shape: f32[1,32], index: 10, kind: input, shape index: {}]
  %s11 = inlined_call_operand.vmem [shape: bf16[32,64], index: 11, kind: input, shape index: {}]
  %s12 = inlined_call_operand.vmem [shape: f32[1,64], index: 12, kind: input, shape index: {}]
  %s13 = inlined_call_operand.vmem [shape: bf16[64,32], index: 13, kind: input, shape index: {}]
  %s14 = inlined_call_operand.vmem [shape: f32[1,32], index: 14, kind: input, shape index: {}]
  %s15 = inlined_call_operand.vmem [shape: f32[1,32], index: 15, kind: input, shape index: {}]
  %s16 = inlined_call_operand.vmem [shape: f32[1,32], index: 16, kind: input, shape index: {}]
  %s17 = inlined_call_operand.vmem [shape: f32[1,32], index: 17, kind: input, shape index: {}]
  %s18 = inlined_call_operand.vmem [shape: f32[1,32], index: 18, kind: input, shape index: {}]
  %s19 = inlined_call_operand.hbm [shape: f32[2,8,32], index: 19, kind: output, shape index: {}]
  %s20 = sld [smem:[#allocation0]]
  $region109: #{decoder_block.1} parent=0
    _
  %s22 = ssub.s32 1, %s20
  %s23 = scalar_select 0, %s22, %s20
  $region1: #{decoder_block.1} parent=0
    #allocation6 [shape = 'u8[8192]{0}', space=vmem, size = 0x2000, scoped, tag = 'output window, operand 0']
    #allocation7 [shape = 's32[2]{0}', space=sflag, size = 0x8, scoped, tag = 'scoped memory for decoder_block.1']
    %24 = vsyncpa [#allocation7], 0
    %s25 = scalar_lea.sflag [#allocation7], 1
    %26 = vsyncpa %s25, 0
    loop: start=0, step=1, limit=4
    $region2: #{decoder_block.1} parent=1 // loop_pre_header
      _
    $region3: #{decoder_block.1} parent=1 // loop_header
      %s28 = sphi 0, %s32
      %p29 = scmp.ge.s32.totalorder %s28, 4
      %s38 = sphi 0, %s40
      %s41 = sphi 0, %s38
      %s42 = sphi 0, %s41
      %s58 = sphi 0, %s42
      %s64 = sphi 0, %s66
      %s67 = sphi 0, %s64
      %s68 = sphi 0, %s67
      %s84 = sphi 0, %s68
      %s88 = sphi 0, %s88
      %s90 = sphi 0, %s88
      %s91 = sphi 0, %s90
      %s105 = sphi 0, %s91
      %s109 = sphi 0, %s109
      %s111 = sphi 0, %s109
      %s112 = sphi 0, %s111
      %s126 = sphi 0, %s112
      %s130 = sphi 0, %s130
      %s132 = sphi 0, %s130
      %s133 = sphi 0, %s132
      %s147 = sphi 0, %s133
      %s151 = sphi 0, %s151
      %s153 = sphi 0, %s151
      %s154 = sphi 0, %s153
      %s168 = sphi 0, %s154
      %s172 = sphi 0, %s172
      %s174 = sphi 0, %s172
      %s175 = sphi 0, %s174
      %s189 = sphi 0, %s175
      %s193 = sphi 0, %s193
      %s195 = sphi 0, %s193
      %s196 = sphi 0, %s195
      %s210 = sphi 0, %s196
      %s214 = sphi 0, %s214
      %s216 = sphi 0, %s214
      %s217 = sphi 0, %s216
      %s231 = sphi 0, %s217
      %s235 = sphi 0, %s235
      %s237 = sphi 0, %s235
      %s238 = sphi 0, %s237
      %s252 = sphi 0, %s238
      %s256 = sphi 0, %s256
      %s258 = sphi 0, %s256
      %s259 = sphi 0, %s258
      %s273 = sphi 0, %s259
      %s277 = sphi 0, %s277
      %s279 = sphi 0, %s277
      %s280 = sphi 0, %s279
      %s294 = sphi 0, %s280
      %s298 = sphi 0, %s298
      %s300 = sphi 0, %s298
      %s301 = sphi 0, %s300
      %s315 = sphi 0, %s301
      %s319 = sphi 0, %s319
      %s321 = sphi 0, %s319
      %s322 = sphi 0, %s321
      %s336 = sphi 0, %s322
      %s340 = sphi 0, %s340
      %s342 = sphi 0, %s340
      %s343 = sphi 0, %s342
      %s357 = sphi 0, %s343
      %s361 = sphi 0, %s361
      %s363 = sphi 0, %s361
      %s364 = sphi 0, %s363
      %s378 = sphi 0, %s364
      %s382 = sphi 0, %s382
      %s384 = sphi 0, %s382
      %s385 = sphi 0, %s384
      %s399 = sphi 0, %s385
      %s403 = sphi 0, %s403
      %s405 = sphi 0, %s403
      %s406 = sphi 0, %s405
      %s420 = sphi 0, %s406
      %s424 = sphi 0, %s424
      %s426 = sphi 0, %s424
      %s427 = sphi 0, %s426
      %s441 = sphi 0, %s427
      %s447 = sphi 0, %s449
      %s450 = sphi 0, %s447
      %s451 = sphi 0, %s450
      %s467 = sphi 0, %s451
    $region4: #{decoder_block.1} parent=1 // loop_header_branch
      %31 = sbr.rel (%p29) target = $region8
    $region5: #{decoder_block.1} parent=1 // loop_body
      %s33 = ssub.s32 %s28, 1
      %s34 = ssub.s32 %s28, 2
      %s35 = sadd.s32 %s28, 1
      %s36 = ssub.s32 %s28, %s35
      %p37 = scmp.eq.s32.totalorder %s36, 0
      %s39 = sadd.s32 %s38, 1
      %s40 = scalar_select %p37, %s38, %s39
      %p43 = pneg %p37
      %p44 = scmp.eq.s32.totalorder %s28, 1
      %p45 = por %p43, %p44
      %p46 = scmp.ne.s32.totalorder %s38, %s41
      %p47 = scmp.eq.s32.totalorder %s28, 0
      %p48 = por %p46, %p47
      %p49 = scmp.ne.s32.totalorder %s38, %s41
      %p50 = scmp.eq.s32.totalorder %s33, 1
      %p51 = por %p49, %p50
      %p52 = scmp.ne.s32.totalorder %s41, %s42
      %p53 = scmp.eq.s32.totalorder %s33, 0
      %p54 = por %p52, %p53
      %p55 = scmp.ne.s32.totalorder %s41, %s42
      %p56 = scmp.eq.s32.totalorder %s34, 1
      %p57 = por %p55, %p56
      %p59 = scmp.ne.s32.totalorder %s42, %s58
      %p60 = scmp.eq.s32.totalorder %s34, 0
      %p61 = por %p59, %p60
      %s62 = ssub.s32 %s28, %s35
      %p63 = scmp.eq.s32.totalorder %s62, 0
      %s65 = sadd.s32 %s64, 1
      %s66 = scalar_select %p63, %s64, %s65
      %p69 = pneg %p63
      %p70 = scmp.eq.s32.totalorder %s28, 1
      %p71 = por %p69, %p70
      %p72 = scmp.ne.s32.totalorder %s64, %s67
      %p73 = scmp.eq.s32.totalorder %s28, 0
      %p74 = por %p72, %p73
      %p75 = scmp.ne.s32.totalorder %s64, %s67
      %p76 = scmp.eq.s32.totalorder %s33, 1
      %p77 = por %p75, %p76
      %p78 = scmp.ne.s32.totalorder %s67, %s68
      %p79 = scmp.eq.s32.totalorder %s33, 0
      %p80 = por %p78, %p79
      %p81 = scmp.ne.s32.totalorder %s67, %s68
      %p82 = scmp.eq.s32.totalorder %s34, 1
      %p83 = por %p81, %p82
      %p85 = scmp.ne.s32.totalorder %s68, %s84
      %p86 = scmp.eq.s32.totalorder %s34, 0
      %p87 = por %p85, %p86
      %s89 = sadd.s32 %s88, 1
      %p92 = scmp.eq.s32.totalorder %s28, 1
      %p93 = scmp.ne.s32.totalorder %s88, %s90
      %p94 = scmp.eq.s32.totalorder %s28, 0
      %p95 = por %p93, %p94
      %p96 = scmp.ne.s32.totalorder %s88, %s90
      %p97 = scmp.eq.s32.totalorder %s33, 1
      %p98 = por %p96, %p97
      %p99 = scmp.ne.s32.totalorder %s90, %s91
      %p100 = scmp.eq.s32.totalorder %s33, 0
      %p101 = por %p99, %p100
      %p102 = scmp.ne.s32.totalorder %s90, %s91
      %p103 = scmp.eq.s32.totalorder %s34, 1
      %p104 = por %p102, %p103
      %p106 = scmp.ne.s32.totalorder %s91, %s105
      %p107 = scmp.eq.s32.totalorder %s34, 0
      %p108 = por %p106, %p107
      %s110 = sadd.s32 %s109, 1
      %p113 = scmp.eq.s32.totalorder %s28, 1
      %p114 = scmp.ne.s32.totalorder %s109, %s111
      %p115 = scmp.eq.s32.totalorder %s28, 0
      %p116 = por %p114, %p115
      %p117 = scmp.ne.s32.totalorder %s109, %s111
      %p118 = scmp.eq.s32.totalorder %s33, 1
      %p119 = por %p117, %p118
      %p120 = scmp.ne.s32.totalorder %s111, %s112
      %p121 = scmp.eq.s32.totalorder %s33, 0
      %p122 = por %p120, %p121
      %p123 = scmp.ne.s32.totalorder %s111, %s112
      %p124 = scmp.eq.s32.totalorder %s34, 1
      %p125 = por %p123, %p124
      %p127 = scmp.ne.s32.totalorder %s112, %s126
      %p128 = scmp.eq.s32.totalorder %s34, 0
      %p129 = por %p127, %p128
      %s131 = sadd.s32 %s130, 1
      %p134 = scmp.eq.s32.totalorder %s28, 1
      %p135 = scmp.ne.s32.totalorder %s130, %s132
      %p136 = scmp.eq.s32.totalorder %s28, 0
      %p137 = por %p135, %p136
      %p138 = scmp.ne.s32.totalorder %s130, %s132
      %p139 = scmp.eq.s32.totalorder %s33, 1
      %p140 = por %p138, %p139
      %p141 = scmp.ne.s32.totalorder %s132, %s133
      %p142 = scmp.eq.s32.totalorder %s33, 0
      %p143 = por %p141, %p142
      %p144 = scmp.ne.s32.totalorder %s132, %s133
      %p145 = scmp.eq.s32.totalorder %s34, 1
      %p146 = por %p144, %p145
      %p148 = scmp.ne.s32.totalorder %s133, %s147
      %p149 = scmp.eq.s32.totalorder %s34, 0
      %p150 = por %p148, %p149
      %s152 = sadd.s32 %s151, 1
      %p155 = scmp.eq.s32.totalorder %s28, 1
      %p156 = scmp.ne.s32.totalorder %s151, %s153
      %p157 = scmp.eq.s32.totalorder %s28, 0
      %p158 = por %p156, %p157
      %p159 = scmp.ne.s32.totalorder %s151, %s153
      %p160 = scmp.eq.s32.totalorder %s33, 1
      %p161 = por %p159, %p160
      %p162 = scmp.ne.s32.totalorder %s153, %s154
      %p163 = scmp.eq.s32.totalorder %s33, 0
      %p164 = por %p162, %p163
      %p165 = scmp.ne.s32.totalorder %s153, %s154
      %p166 = scmp.eq.s32.totalorder %s34, 1
      %p167 = por %p165, %p166
      %p169 = scmp.ne.s32.totalorder %s154, %s168
      %p170 = scmp.eq.s32.totalorder %s34, 0
      %p171 = por %p169, %p170
      %s173 = sadd.s32 %s172, 1
      %p176 = scmp.eq.s32.totalorder %s28, 1
      %p177 = scmp.ne.s32.totalorder %s172, %s174
      %p178 = scmp.eq.s32.totalorder %s28, 0
      %p179 = por %p177, %p178
      %p180 = scmp.ne.s32.totalorder %s172, %s174
      %p181 = scmp.eq.s32.totalorder %s33, 1
      %p182 = por %p180, %p181
      %p183 = scmp.ne.s32.totalorder %s174, %s175
      %p184 = scmp.eq.s32.totalorder %s33, 0
      %p185 = por %p183, %p184
      %p186 = scmp.ne.s32.totalorder %s174, %s175
      %p187 = scmp.eq.s32.totalorder %s34, 1
      %p188 = por %p186, %p187
      %p190 = scmp.ne.s32.totalorder %s175, %s189
      %p191 = scmp.eq.s32.totalorder %s34, 0
      %p192 = por %p190, %p191
      %s194 = sadd.s32 %s193, 1
      %p197 = scmp.eq.s32.totalorder %s28, 1
      %p198 = scmp.ne.s32.totalorder %s193, %s195
      %p199 = scmp.eq.s32.totalorder %s28, 0
      %p200 = por %p198, %p199
      %p201 = scmp.ne.s32.totalorder %s193, %s195
      %p202 = scmp.eq.s32.totalorder %s33, 1
      %p203 = por %p201, %p202
      %p204 = scmp.ne.s32.totalorder %s195, %s196
      %p205 = scmp.eq.s32.totalorder %s33, 0
      %p206 = por %p204, %p205
      %p207 = scmp.ne.s32.totalorder %s195, %s196
      %p208 = scmp.eq.s32.totalorder %s34, 1
      %p209 = por %p207, %p208
      %p211 = scmp.ne.s32.totalorder %s196, %s210
      %p212 = scmp.eq.s32.totalorder %s34, 0
      %p213 = por %p211, %p212
      %s215 = sadd.s32 %s214, 1
      %p218 = scmp.eq.s32.totalorder %s28, 1
      %p219 = scmp.ne.s32.totalorder %s214, %s216
      %p220 = scmp.eq.s32.totalorder %s28, 0
      %p221 = por %p219, %p220
      %p222 = scmp.ne.s32.totalorder %s214, %s216
      %p223 = scmp.eq.s32.totalorder %s33, 1
      %p224 = por %p222, %p223
      %p225 = scmp.ne.s32.totalorder %s216, %s217
      %p226 = scmp.eq.s32.totalorder %s33, 0
      %p227 = por %p225, %p226
      %p228 = scmp.ne.s32.totalorder %s216, %s217
      %p229 = scmp.eq.s32.totalorder %s34, 1
      %p230 = por %p228, %p229
      %p232 = scmp.ne.s32.totalorder %s217, %s231
      %p233 = scmp.eq.s32.totalorder %s34, 0
      %p234 = por %p232, %p233
      %s236 = sadd.s32 %s235, 1
      %p239 = scmp.eq.s32.totalorder %s28, 1
      %p240 = scmp.ne.s32.totalorder %s235, %s237
      %p241 = scmp.eq.s32.totalorder %s28, 0
      %p242 = por %p240, %p241
      %p243 = scmp.ne.s32.totalorder %s235, %s237
      %p244 = scmp.eq.s32.totalorder %s33, 1
      %p245 = por %p243, %p244
      %p246 = scmp.ne.s32.totalorder %s237, %s238
      %p247 = scmp.eq.s32.totalorder %s33, 0
      %p248 = por %p246, %p247
      %p249 = scmp.ne.s32.totalorder %s237, %s238
      %p250 = scmp.eq.s32.totalorder %s34, 1
      %p251 = por %p249, %p250
      %p253 = scmp.ne.s32.totalorder %s238, %s252
      %p254 = scmp.eq.s32.totalorder %s34, 0
      %p255 = por %p253, %p254
      %s257 = sadd.s32 %s256, 1
      %p260 = scmp.eq.s32.totalorder %s28, 1
      %p261 = scmp.ne.s32.totalorder %s256, %s258
      %p262 = scmp.eq.s32.totalorder %s28, 0
      %p263 = por %p261, %p262
      %p264 = scmp.ne.s32.totalorder %s256, %s258
      %p265 = scmp.eq.s32.totalorder %s33, 1
      %p266 = por %p264, %p265
      %p267 = scmp.ne.s32.totalorder %s258, %s259
      %p268 = scmp.eq.s32.totalorder %s33, 0
      %p269 = por %p267, %p268
      %p270 = scmp.ne.s32.totalorder %s258, %s259
      %p271 = scmp.eq.s32.totalorder %s34, 1
      %p272 = por %p270, %p271
      %p274 = scmp.ne.s32.totalorder %s259, %s273
      %p275 = scmp.eq.s32.totalorder %s34, 0
      %p276 = por %p274, %p275
      %s278 = sadd.s32 %s277, 1
      %p281 = scmp.eq.s32.totalorder %s28, 1
      %p282 = scmp.ne.s32.totalorder %s277, %s279
      %p283 = scmp.eq.s32.totalorder %s28, 0
      %p284 = por %p282, %p283
      %p285 = scmp.ne.s32.totalorder %s277, %s279
      %p286 = scmp.eq.s32.totalorder %s33, 1
      %p287 = por %p285, %p286
      %p288 = scmp.ne.s32.totalorder %s279, %s280
      %p289 = scmp.eq.s32.totalorder %s33, 0
      %p290 = por %p288, %p289
      %p291 = scmp.ne.s32.totalorder %s279, %s280
      %p292 = scmp.eq.s32.totalorder %s34, 1
      %p293 = por %p291, %p292
      %p295 = scmp.ne.s32.totalorder %s280, %s294
      %p296 = scmp.eq.s32.totalorder %s34, 0
      %p297 = por %p295, %p296
      %s299 = sadd.s32 %s298, 1
      %p302 = scmp.eq.s32.totalorder %s28, 1
      %p303 = scmp.ne.s32.totalorder %s298, %s300
      %p304 = scmp.eq.s32.totalorder %s28, 0
      %p305 = por %p303, %p304
      %p306 = scmp.ne.s32.totalorder %s298, %s300
      %p307 = scmp.eq.s32.totalorder %s33, 1
      %p308 = por %p306, %p307
      %p309 = scmp.ne.s32.totalorder %s300, %s301
      %p310 = scmp.eq.s32.totalorder %s33, 0
      %p311 = por %p309, %p310
      %p312 = scmp.ne.s32.totalorder %s300, %s301
      %p313 = scmp.eq.s32.totalorder %s34, 1
      %p314 = por %p312, %p313
      %p316 = scmp.ne.s32.totalorder %s301, %s315
      %p317 = scmp.eq.s32.totalorder %s34, 0
      %p318 = por %p316, %p317
      %s320 = sadd.s32 %s319, 1
      %p323 = scmp.eq.s32.totalorder %s28, 1
      %p324 = scmp.ne.s32.totalorder %s319, %s321
      %p325 = scmp.eq.s32.totalorder %s28, 0
      %p326 = por %p324, %p325
      %p327 = scmp.ne.s32.totalorder %s319, %s321
      %p328 = scmp.eq.s32.totalorder %s33, 1
      %p329 = por %p327, %p328
      %p330 = scmp.ne.s32.totalorder %s321, %s322
      %p331 = scmp.eq.s32.totalorder %s33, 0
      %p332 = por %p330, %p331
      %p333 = scmp.ne.s32.totalorder %s321, %s322
      %p334 = scmp.eq.s32.totalorder %s34, 1
      %p335 = por %p333, %p334
      %p337 = scmp.ne.s32.totalorder %s322, %s336
      %p338 = scmp.eq.s32.totalorder %s34, 0
      %p339 = por %p337, %p338
      %s341 = sadd.s32 %s340, 1
      %p344 = scmp.eq.s32.totalorder %s28, 1
      %p345 = scmp.ne.s32.totalorder %s340, %s342
      %p346 = scmp.eq.s32.totalorder %s28, 0
      %p347 = por %p345, %p346
      %p348 = scmp.ne.s32.totalorder %s340, %s342
      %p349 = scmp.eq.s32.totalorder %s33, 1
      %p350 = por %p348, %p349
      %p351 = scmp.ne.s32.totalorder %s342, %s343
      %p352 = scmp.eq.s32.totalorder %s33, 0
      %p353 = por %p351, %p352
      %p354 = scmp.ne.s32.totalorder %s342, %s343
      %p355 = scmp.eq.s32.totalorder %s34, 1
      %p356 = por %p354, %p355
      %p358 = scmp.ne.s32.totalorder %s343, %s357
      %p359 = scmp.eq.s32.totalorder %s34, 0
      %p360 = por %p358, %p359
      %s362 = sadd.s32 %s361, 1
      %p365 = scmp.eq.s32.totalorder %s28, 1
      %p366 = scmp.ne.s32.totalorder %s361, %s363
      %p367 = scmp.eq.s32.totalorder %s28, 0
      %p368 = por %p366, %p367
      %p369 = scmp.ne.s32.totalorder %s361, %s363
      %p370 = scmp.eq.s32.totalorder %s33, 1
      %p371 = por %p369, %p370
      %p372 = scmp.ne.s32.totalorder %s363, %s364
      %p373 = scmp.eq.s32.totalorder %s33, 0
      %p374 = por %p372, %p373
      %p375 = scmp.ne.s32.totalorder %s363, %s364
      %p376 = scmp.eq.s32.totalorder %s34, 1
      %p377 = por %p375, %p376
      %p379 = scmp.ne.s32.totalorder %s364, %s378
      %p380 = scmp.eq.s32.totalorder %s34, 0
      %p381 = por %p379, %p380
      %s383 = sadd.s32 %s382, 1
      %p386 = scmp.eq.s32.totalorder %s28, 1
      %p387 = scmp.ne.s32.totalorder %s382, %s384
      %p388 = scmp.eq.s32.totalorder %s28, 0
      %p389 = por %p387, %p388
      %p390 = scmp.ne.s32.totalorder %s382, %s384
      %p391 = scmp.eq.s32.totalorder %s33, 1
      %p392 = por %p390, %p391
      %p393 = scmp.ne.s32.totalorder %s384, %s385
      %p394 = scmp.eq.s32.totalorder %s33, 0
      %p395 = por %p393, %p394
      %p396 = scmp.ne.s32.totalorder %s384, %s385
      %p397 = scmp.eq.s32.totalorder %s34, 1
      %p398 = por %p396, %p397
      %p400 = scmp.ne.s32.totalorder %s385, %s399
      %p401 = scmp.eq.s32.totalorder %s34, 0
      %p402 = por %p400, %p401
      %s404 = sadd.s32 %s403, 1
      %p407 = scmp.eq.s32.totalorder %s28, 1
      %p408 = scmp.ne.s32.totalorder %s403, %s405
      %p409 = scmp.eq.s32.totalorder %s28, 0
      %p410 = por %p408, %p409
      %p411 = scmp.ne.s32.totalorder %s403, %s405
      %p412 = scmp.eq.s32.totalorder %s33, 1
      %p413 = por %p411, %p412
      %p414 = scmp.ne.s32.totalorder %s405, %s406
      %p415 = scmp.eq.s32.totalorder %s33, 0
      %p416 = por %p414, %p415
      %p417 = scmp.ne.s32.totalorder %s405, %s406
      %p418 = scmp.eq.s32.totalorder %s34, 1
      %p419 = por %p417, %p418
      %p421 = scmp.ne.s32.totalorder %s406, %s420
      %p422 = scmp.eq.s32.totalorder %s34, 0
      %p423 = por %p421, %p422
      %s425 = sadd.s32 %s424, 1
      %p428 = scmp.eq.s32.totalorder %s28, 1
      %p429 = scmp.ne.s32.totalorder %s424, %s426
      %p430 = scmp.eq.s32.totalorder %s28, 0
      %p431 = por %p429, %p430
      %p432 = scmp.ne.s32.totalorder %s424, %s426
      %p433 = scmp.eq.s32.totalorder %s33, 1
      %p434 = por %p432, %p433
      %p435 = scmp.ne.s32.totalorder %s426, %s427
      %p436 = scmp.eq.s32.totalorder %s33, 0
      %p437 = por %p435, %p436
      %p438 = scmp.ne.s32.totalorder %s426, %s427
      %p439 = scmp.eq.s32.totalorder %s34, 1
      %p440 = por %p438, %p439
      %p442 = scmp.ne.s32.totalorder %s427, %s441
      %p443 = scmp.eq.s32.totalorder %s34, 0
      %p444 = por %p442, %p443
      %s445 = ssub.s32 %s28, %s35
      %p446 = scmp.eq.s32.totalorder %s445, 0
      %s448 = sadd.s32 %s447, 1
      %s449 = scalar_select %p446, %s447, %s448
      %p452 = pneg %p446
      %p453 = scmp.eq.s32.totalorder %s28, 1
      %p454 = por %p452, %p453
      %p455 = scmp.ne.s32.totalorder %s447, %s450
      %p456 = scmp.eq.s32.totalorder %s28, 0
      %p457 = por %p455, %p456
      %p458 = scmp.ne.s32.totalorder %s447, %s450
      %p459 = scmp.eq.s32.totalorder %s33, 1
      %p460 = por %p458, %p459
      %p461 = scmp.ne.s32.totalorder %s450, %s451
      %p462 = scmp.eq.s32.totalorder %s33, 0
      %p463 = por %p461, %p462
      %p464 = scmp.ne.s32.totalorder %s450, %s451
      %p465 = scmp.eq.s32.totalorder %s34, 1
      %p466 = por %p464, %p465
      %p468 = scmp.ne.s32.totalorder %s451, %s467
      %p469 = scmp.eq.s32.totalorder %s34, 0
      %p470 = por %p468, %p469
      %p471 = scmp.le.s32.totalorder 1, %s28
      %p472 = scmp.lt.s32.totalorder %s28, 3
      %p473 = pnand %p471, %p472
      %p474 = pneg %p473
      // Predicated region
      $region9: #{decoder_block.1} parent=5 // pred_check
        _
      $region10: #{decoder_block.1} parent=5 // pred_check_branch
        %476 = sbr.rel (%p473) target = $region12
      $region11: #{decoder_block.1} parent=5 // pred_region
        %s477 = ssub.s32 %s28, 1
        // Predicated region
        $region13: #{decoder_block.1} parent=11 // pred_check
          %p478 = pneg %p101
        $region14: #{decoder_block.1} parent=11 // pred_check_branch
          %480 = sbr.rel (%p478) target = $region16
        $region15: #{decoder_block.1} parent=11 // pred_region
          _
        $region16: #{decoder_block.1} parent=11 // pred_fallthru
          _
        // Predicated region
        $region17: #{decoder_block.1} parent=11 // pred_check
          %p481 = pneg %p122
        $region18: #{decoder_block.1} parent=11 // pred_check_branch
          %483 = sbr.rel (%p481) target = $region20
        $region19: #{decoder_block.1} parent=11 // pred_region
          _
        $region20: #{decoder_block.1} parent=11 // pred_fallthru
          _
        // Predicated region
        $region21: #{decoder_block.1} parent=11 // pred_check
          %p484 = pneg %p143
        $region22: #{decoder_block.1} parent=11 // pred_check_branch
          %486 = sbr.rel (%p484) target = $region24
        $region23: #{decoder_block.1} parent=11 // pred_region
          _
        $region24: #{decoder_block.1} parent=11 // pred_fallthru
          _
        // Predicated region
        $region25: #{decoder_block.1} parent=11 // pred_check
          %p487 = pneg %p164
        $region26: #{decoder_block.1} parent=11 // pred_check_branch
          %489 = sbr.rel (%p487) target = $region28
        $region27: #{decoder_block.1} parent=11 // pred_region
          _
        $region28: #{decoder_block.1} parent=11 // pred_fallthru
          _
        // Predicated region
        $region29: #{decoder_block.1} parent=11 // pred_check
          %p490 = pneg %p185
        $region30: #{decoder_block.1} parent=11 // pred_check_branch
          %492 = sbr.rel (%p490) target = $region32
        $region31: #{decoder_block.1} parent=11 // pred_region
          _
        $region32: #{decoder_block.1} parent=11 // pred_fallthru
          _
        // Predicated region
        $region33: #{decoder_block.1} parent=11 // pred_check
          %p493 = pneg %p206
        $region34: #{decoder_block.1} parent=11 // pred_check_branch
          %495 = sbr.rel (%p493) target = $region36
        $region35: #{decoder_block.1} parent=11 // pred_region
          _
        $region36: #{decoder_block.1} parent=11 // pred_fallthru
          _
        // Predicated region
        $region37: #{decoder_block.1} parent=11 // pred_check
          %p496 = pneg %p227
        $region38: #{decoder_block.1} parent=11 // pred_check_branch
          %498 = sbr.rel (%p496) target = $region40
        $region39: #{decoder_block.1} parent=11 // pred_region
          _
        $region40: #{decoder_block.1} parent=11 // pred_fallthru
          _
        // Predicated region
        $region41: #{decoder_block.1} parent=11 // pred_check
          %p499 = pneg %p248
        $region42: #{decoder_block.1} parent=11 // pred_check_branch
          %501 = sbr.rel (%p499) target = $region44
        $region43: #{decoder_block.1} parent=11 // pred_region
          _
        $region44: #{decoder_block.1} parent=11 // pred_fallthru
          _
        // Predicated region
        $region45: #{decoder_block.1} parent=11 // pred_check
          %p502 = pneg %p269
        $region46: #{decoder_block.1} parent=11 // pred_check_branch
          %504 = sbr.rel (%p502) target = $region48
        $region47: #{decoder_block.1} parent=11 // pred_region
          _
        $region48: #{decoder_block.1} parent=11 // pred_fallthru
          _
        // Predicated region
        $region49: #{decoder_block.1} parent=11 // pred_check
          %p505 = pneg %p290
        $region50: #{decoder_block.1} parent=11 // pred_check_branch
          %507 = sbr.rel (%p505) target = $region52
        $region51: #{decoder_block.1} parent=11 // pred_region
          _
        $region52: #{decoder_block.1} parent=11 // pred_fallthru
          _
        // Predicated region
        $region53: #{decoder_block.1} parent=11 // pred_check
          %p508 = pneg %p311
        $region54: #{decoder_block.1} parent=11 // pred_check_branch
          %510 = sbr.rel (%p508) target = $region56
        $region55: #{decoder_block.1} parent=11 // pred_region
          _
        $region56: #{decoder_block.1} parent=11 // pred_fallthru
          _
        // Predicated region
        $region57: #{decoder_block.1} parent=11 // pred_check
          %p511 = pneg %p332
        $region58: #{decoder_block.1} parent=11 // pred_check_branch
          %513 = sbr.rel (%p511) target = $region60
        $region59: #{decoder_block.1} parent=11 // pred_region
          _
        $region60: #{decoder_block.1} parent=11 // pred_fallthru
          _
        // Predicated region
        $region61: #{decoder_block.1} parent=11 // pred_check
          %p514 = pneg %p353
        $region62: #{decoder_block.1} parent=11 // pred_check_branch
          %516 = sbr.rel (%p514) target = $region64
        $region63: #{decoder_block.1} parent=11 // pred_region
          _
        $region64: #{decoder_block.1} parent=11 // pred_fallthru
          _
        // Predicated region
        $region65: #{decoder_block.1} parent=11 // pred_check
          %p517 = pneg %p374
        $region66: #{decoder_block.1} parent=11 // pred_check_branch
          %519 = sbr.rel (%p517) target = $region68
        $region67: #{decoder_block.1} parent=11 // pred_region
          _
        $region68: #{decoder_block.1} parent=11 // pred_fallthru
          _
        // Predicated region
        $region69: #{decoder_block.1} parent=11 // pred_check
          %p520 = pneg %p395
        $region70: #{decoder_block.1} parent=11 // pred_check_branch
          %522 = sbr.rel (%p520) target = $region72
        $region71: #{decoder_block.1} parent=11 // pred_region
          _
        $region72: #{decoder_block.1} parent=11 // pred_fallthru
          _
        // Predicated region
        $region73: #{decoder_block.1} parent=11 // pred_check
          %p523 = pneg %p416
        $region74: #{decoder_block.1} parent=11 // pred_check_branch
          %525 = sbr.rel (%p523) target = $region76
        $region75: #{decoder_block.1} parent=11 // pred_region
          _
        $region76: #{decoder_block.1} parent=11 // pred_fallthru
          _
        // Predicated region
        $region77: #{decoder_block.1} parent=11 // pred_check
          %p526 = pneg %p437
        $region78: #{decoder_block.1} parent=11 // pred_check_branch
          %528 = sbr.rel (%p526) target = $region80
        $region79: #{decoder_block.1} parent=11 // pred_region
          _
        $region80: #{decoder_block.1} parent=11 // pred_fallthru
          _
      $region12: #{decoder_block.1} parent=5 // pred_fallthru
        _
      %p529 = scmp.lt.s32.totalorder %s28, 2
      // Predicated region
      $region81: #{decoder_block.1} parent=5 // pred_check
        %p530 = pneg %p529
      $region82: #{decoder_block.1} parent=5 // pred_check_branch
        %532 = sbr.rel (%p530) target = $region84
      $region83: #{decoder_block.1} parent=5 // pred_region
        // Predicated region
        $region85: #{decoder_block.1} parent=83 // pred_check
          %p533 = pneg %p48
        $region86: #{decoder_block.1} parent=83 // pred_check_branch
          %535 = sbr.rel (%p533) target = $region88
        $region87: #{decoder_block.1} parent=83 // pred_region
          %p536 = scmp.lt.s32.totalorder %s28, 1
          %s537 = scalar_select %p536, %s28, 1
          %s538 = smul.addr %s537, 4
          %s539 = scalar_lea.vmem %s0, %s538
        $region88: #{decoder_block.1} parent=83 // pred_fallthru
          _
        // Predicated region
        $region89: #{decoder_block.1} parent=83 // pred_check
          %p540 = pneg %p74
        $region90: #{decoder_block.1} parent=83 // pred_check_branch
          %542 = sbr.rel (%p540) target = $region92
        $region91: #{decoder_block.1} parent=83 // pred_region
          %p543 = scmp.lt.s32.totalorder %s28, 1
          %s544 = scalar_select %p543, %s28, 1
          %s545 = smul.addr %s544, 8
          %s546 = scalar_lea.vmem %s1, %s545
        $region92: #{decoder_block.1} parent=83 // pred_fallthru
          _
      $region84: #{decoder_block.1} parent=5 // pred_fallthru
        _
      %p547 = scmp.le.s32.totalorder 1, %s28
      %p548 = scmp.lt.s32.totalorder %s28, 3
      %p549 = pnand %p547, %p548
      %p550 = pneg %p549
      // Predicated region
      $region93: #{decoder_block.1} parent=5 // pred_check
        _
      $region94: #{decoder_block.1} parent=5 // pred_check_branch
        %552 = sbr.rel (%p549) target = $region96
      $region95: #{decoder_block.1} parent=5 // pred_region
        %s553 = ssub.s32 %s28, 1
        %p554 = scmp.lt.s32.totalorder %s33, 1
        %s555 = scalar_select %p554, %s33, 1
        %s556 = smul.addr %s555, 4
        %s557 = scalar_lea.vmem %s0, %s556
        %p558 = pneg %p54
        %p559 = pneg %p51
        %p560 = scmp.lt.s32.totalorder %s33, 1
        %s561 = scalar_select %p560, %s33, 1
        %s562 = smul.addr %s561, 8
        %s563 = scalar_lea.vmem %s1, %s562
        %p564 = pneg %p80
        %p565 = pneg %p77
        %p566 = pneg %p101
        %p567 = pneg %p98
        %p568 = pneg %p122
        %p569 = pneg %p119
        %p570 = pneg %p143
        %p571 = pneg %p140
        %p572 = pneg %p164
        %p573 = pneg %p161
        %p574 = pneg %p185
        %p575 = pneg %p182
        %p576 = pneg %p206
        %p577 = pneg %p203
        %p578 = pneg %p227
        %p579 = pneg %p224
        %p580 = pneg %p248
        %p581 = pneg %p245
        %p582 = pneg %p269
        %p583 = pneg %p266
        %p584 = pneg %p290
        %p585 = pneg %p287
        %p586 = pneg %p311
        %p587 = pneg %p308
        %p588 = pneg %p332
        %p589 = pneg %p329
        %p590 = pneg %p353
        %p591 = pneg %p350
        %p592 = pneg %p374
        %p593 = pneg %p371
        %p594 = pneg %p395
        %p595 = pneg %p392
        %p596 = pneg %p416
        %p597 = pneg %p413
        %p598 = pneg %p437
        %p599 = pneg %p434
        %p600 = pneg %p463
        %p601 = pneg %p460
        %s602 = sand.u32 %s450, 1
        %s603 = scalar_lea.sflag [#allocation7], %s602
        %s604 = sand.u32 %s450, 1
        %s605 = smul.addr %s604, 8
        %s606 = scalar_lea.vmem [#allocation6], %s605
        %p607 = scmp.lt.s32.totalorder %s33, 1
        %s608 = scalar_select %p607, %s33, 1
        %s609 = smul.addr %s608, 4
        %s610 = scalar_lea.vmem %s0, %s609
        %p611 = scmp.lt.s32.totalorder %s33, 1
        %s612 = scalar_select %p611, %s33, 1
        %s613 = smul.addr %s612, 8
        %s614 = scalar_lea.vmem %s1, %s613
        %v616 = vld [vmem:[%s610] sm:$0xf]
        %v617 = vld [vmem:[%s614] sm:$0xff]
        %v618 = vpack.c.bf16 %v617, %v617
        %v619 = vld [vmem:[%s3] sm:$0xf]
        %v620 = vld [vmem:[%s3 + $0x4] sm:$0xf]
        %v621 = vld [vmem:[%s3 + $0x8] sm:$0xf]
        %v622 = vld [vmem:[%s3 + $0xc] sm:$0xf]
        %v623 = vld [vmem:[%s4] sm:$0x1]
        %v625 = vperm.slane %v623, 0
        %v631 = vunpack.c.l.b16 %v619
        %v632 = vunpack.c.l.b16 %v620
        %v633 = vunpack.c.l.b16 %v621
        %v634 = vunpack.c.l.b16 %v622
        %v635 = vpack.c.b16 %v632, %v631
        %v636 = vpack.c.b16 %v634, %v633
        %vm639 = vcmask 261120
        %v641 = vsel %vm639, %v616, 0
        %643 = vmatpush.bf16.msra.mxu0 0
        %644 = vmatpush.bf16.msra.mxu0 0
        %645 = vmatpush.bf16.msra.mxu0 0
        %646 = vmatpush.bf16.msra.mxu0 0
        %647 = vmatpush.bf16.msra.mxu0 0
        %648 = vmatpush.bf16.msra.mxu0 0
        %649 = vmatpush.bf16.msra.mxu0 %v636
        %650 = vmatpush.bf16.msra.mxu0 %v635
        %651 = vmatmul.bf16.gmra.mxu0 %v641
        %v652 = vpop.f32.mrf.mxu0
        %v653 = vadd.f32 %v625, %v652
        %v654 = vpop.f32.mrf.mxu0
        %655 = vdwg.mxu0
        %v656 = vmul.f32 %v653, 0.25
        %v657 = vld [vmem:[%s5] sm:$0xf]
        %v658 = vld [vmem:[%s5 + $0x4] sm:$0xf]
        %v659 = vld [vmem:[%s5 + $0x8] sm:$0xf]
        %v660 = vld [vmem:[%s5 + $0xc] sm:$0xf]
        %v661 = vld [vmem:[%s6] sm:$0x1]
        %v663 = vperm.slane %v661, 0
        %v669 = vunpack.c.l.b16 %v657
        %v670 = vunpack.c.l.b16 %v658
        %v671 = vunpack.c.l.b16 %v659
        %v672 = vunpack.c.l.b16 %v660
        %v673 = vpack.c.b16 %v670, %v669
        %v674 = vpack.c.b16 %v672, %v671
        %v678 = vsel %vm639, %v618, 0
        %680 = vmatpush.bf16.msra.mxu0 0
        %681 = vmatpush.bf16.msra.mxu0 0
        %682 = vmatpush.bf16.msra.mxu0 0
        %683 = vmatpush.bf16.msra.mxu0 0
        %684 = vmatpush.bf16.msra.mxu0 0
        %685 = vmatpush.bf16.msra.mxu0 0
        %686 = vmatpush.bf16.msra.mxu0 %v674
        %687 = vmatpush.bf16.msra.mxu0 %v673
        %688 = vmatmul.bf16.gmra.mxu0 %v678
        %v689 = vpop.f32.mrf.mxu0
        %v690 = vadd.f32 %v663, %v689
        %v691 = vpop.f32.mrf.mxu0
        %692 = vdwg.mxu0
        %v693 = vld [vmem:[%s7] sm:$0xf]
        %v694 = vld [vmem:[%s7 + $0x4] sm:$0xf]
        %v695 = vld [vmem:[%s7 + $0x8] sm:$0xf]
        %v696 = vld [vmem:[%s7 + $0xc] sm:$0xf]
        %v697 = vld [vmem:[%s8] sm:$0x1]
        %v699 = vperm.slane %v697, 0
        %v705 = vunpack.c.l.b16 %v693
        %v706 = vunpack.c.l.b16 %v694
        %v707 = vunpack.c.l.b16 %v695
        %v708 = vunpack.c.l.b16 %v696
        %v709 = vpack.c.b16 %v706, %v705
        %v710 = vpack.c.b16 %v708, %v707
        %713 = vmatpush.bf16.msra.mxu0 0
        %714 = vmatpush.bf16.msra.mxu0 0
        %715 = vmatpush.bf16.msra.mxu0 0
        %716 = vmatpush.bf16.msra.mxu0 0
        %717 = vmatpush.bf16.msra.mxu0 0
        %718 = vmatpush.bf16.msra.mxu0 0
        %719 = vmatpush.bf16.msra.mxu0 %v710
        %720 = vmatpush.bf16.msra.mxu0 %v709
        %721 = vmatmul.bf16.gmra.mxu0 %v678
        %v722 = vpop.f32.mrf.mxu0
        %v723 = vadd.f32 %v699, %v722
        %v724 = vpop.f32.mrf.mxu0
        %725 = vdwg.mxu0
        %v726 = vpack.c.bf16 %v656, %v656
        %v727 = vpack.c.bf16 %v690, %v690
        %v728 = vpack.c.bf16 %v723, %v723
        %vm729 = vcmask 125952
        %730 = vst.msk [vmem:[#allocation2] sm:$0xf] %vm729, %v726
        %731 = vst.msk [vmem:[#allocation3] sm:$0xf] %vm729, %v727
        %732 = vst.msk [vmem:[#allocation4] sm:$0xf] %vm729, %v728
        %734 = vrot.lane.b32.xlu0 %v726, 112
        %v735 = vpop.permute.xlu0 %734
        %s737 = scalar_lea.vmem [#allocation2], 4
        %738 = vst.msk [vmem:[%s737] sm:$0xf] %vm729, %v735
        %740 = vrot.lane.b32.xlu0 %v727, 112
        %v741 = vpop.permute.xlu0 %740
        %s743 = scalar_lea.vmem [#allocation3], 4
        %744 = vst.msk [vmem:[%s743] sm:$0xf] %vm729, %v741
        %746 = vrot.lane.b32.xlu0 %v728, 112
        %v747 = vpop.permute.xlu0 %746
        %s749 = scalar_lea.vmem [#allocation4], 4
        %750 = vst.msk [vmem:[%s749] sm:$0xf] %vm729, %v747
        %751 = vrot.lane.b32.xlu0 %v726, 96
        %v752 = vpop.permute.xlu0 %751
        %s754 = scalar_lea.vmem [#allocation2], 8
        %755 = vst.msk [vmem:[%s754] sm:$0xf] %vm729, %v752
        %756 = vrot.lane.b32.xlu0 %v727, 96
        %v757 = vpop.permute.xlu0 %756
        %s759 = scalar_lea.vmem [#allocation3], 8
        %760 = vst.msk [vmem:[%s759] sm:$0xf] %vm729, %v757
        %761 = vrot.lane.b32.xlu0 %v728, 96
        %v762 = vpop.permute.xlu0 %761
        %s764 = scalar_lea.vmem [#allocation4], 8
        %765 = vst.msk [vmem:[%s764] sm:$0xf] %vm729, %v762
        %766 = vrot.lane.b32.xlu0 %v726, 80
        %v767 = vpop.permute.xlu0 %766
        %s769 = scalar_lea.vmem [#allocation2], 12
        %770 = vst.msk [vmem:[%s769] sm:$0xf] %vm729, %v767
        %771 = vrot.lane.b32.xlu0 %v727, 80
        %v772 = vpop.permute.xlu0 %771
        %s774 = scalar_lea.vmem [#allocation3], 12
        %775 = vst.msk [vmem:[%s774] sm:$0xf] %vm729, %v772
        %776 = vrot.lane.b32.xlu0 %v728, 80
        %v777 = vpop.permute.xlu0 %776
        %s779 = scalar_lea.vmem [#allocation4], 12
        %780 = vst.msk [vmem:[%s779] sm:$0xf] %vm729, %v777
        %v781 = vld [vmem:[#allocation2] sm:$0xf]
        %v782 = vld [vmem:[#allocation2 + $0x4] sm:$0xf]
        %v783 = vld [vmem:[#allocation2 + $0x8] sm:$0xf]
        %v784 = vld [vmem:[#allocation2 + $0xc] sm:$0xf]
        %v785 = vld [vmem:[#allocation3] sm:$0xf]
        %v786 = vld [vmem:[#allocation3 + $0x4] sm:$0xf]
        %v787 = vld [vmem:[#allocation3 + $0x8] sm:$0xf]
        %v788 = vld [vmem:[#allocation3 + $0xc] sm:$0xf]
        %v789 = vld [vmem:[%s2] sm:$0xff]
        %vm790 = vcmask 130048
        %v792 = vsel %vm790, %v781, 0
        %v795 = vsel %vm790, %v785, 0
        %797 = vmatpush.bf16.xpose.msra.mxu0 0
        %798 = vmatpush.bf16.xpose.msra.mxu0 0
        %799 = vmatpush.bf16.xpose.msra.mxu0 0
        %800 = vmatpush.bf16.xpose.msra.mxu0 0
        %801 = vmatpush.bf16.xpose.msra.mxu0 0
        %802 = vmatpush.bf16.xpose.msra.mxu0 0
        %803 = vmatpush.bf16.xpose.msra.mxu0 0
        %804 = vmatpush.bf16.xpose.msra.mxu0 %v795
        %805 = vmatmul.bf16.gmra.mxu0 %v792
        %v806 = vpop.f32.mrf.mxu0
        %v807 = vadd.f32 %v789, %v806
        %v808 = vpop.f32.mrf.mxu0
        %809 = vdwg.mxu0
        %v811 = vsel %vm790, %v782, 0
        %v814 = vsel %vm790, %v786, 0
        %816 = vmatpush.bf16.xpose.msra.mxu0 0
        %817 = vmatpush.bf16.xpose.msra.mxu0 0
        %818 = vmatpush.bf16.xpose.msra.mxu0 0
        %819 = vmatpush.bf16.xpose.msra.mxu0 0
        %820 = vmatpush.bf16.xpose.msra.mxu0 0
        %821 = vmatpush.bf16.xpose.msra.mxu0 0
        %822 = vmatpush.bf16.xpose.msra.mxu0 0
        %823 = vmatpush.bf16.xpose.msra.mxu0 %v814
        %824 = vmatmul.bf16.gmra.mxu0 %v811
        %v825 = vpop.f32.mrf.mxu0
        %v826 = vadd.f32 %v789, %v825
        %v827 = vpop.f32.mrf.mxu0
        %828 = vdwg.mxu0
        %v830 = vsel %vm790, %v783, 0
        %v833 = vsel %vm790, %v787, 0
        %835 = vmatpush.bf16.xpose.msra.mxu0 0
        %836 = vmatpush.bf16.xpose.msra.mxu0 0
        %837 = vmatpush.bf16.xpose.msra.mxu0 0
        %838 = vmatpush.bf16.xpose.msra.mxu0 0
        %839 = vmatpush.bf16.xpose.msra.mxu0 0
        %840 = vmatpush.bf16.xpose.msra.mxu0 0
        %841 = vmatpush.bf16.xpose.msra.mxu0 0
        %842 = vmatpush.bf16.xpose.msra.mxu0 %v833
        %843 = vmatmul.bf16.gmra.mxu0 %v830
        %v844 = vpop.f32.mrf.mxu0
        %v845 = vadd.f32 %v789, %v844
        %v846 = vpop.f32.mrf.mxu0
        %847 = vdwg.mxu0
        %v849 = vsel %vm790, %v784, 0
        %v852 = vsel %vm790, %v788, 0
        %854 = vmatpush.bf16.xpose.msra.mxu0 0
        %855 = vmatpush.bf16.xpose.msra.mxu0 0
        %856 = vmatpush.bf16.xpose.msra.mxu0 0
        %857 = vmatpush.bf16.xpose.msra.mxu0 0
        %858 = vmatpush.bf16.xpose.msra.mxu0 0
        %859 = vmatpush.bf16.xpose.msra.mxu0 0
        %860 = vmatpush.bf16.xpose.msra.mxu0 0
        %861 = vmatpush.bf16.xpose.msra.mxu0 %v852
        %862 = vmatmul.bf16.gmra.mxu0 %v849
        %v863 = vpop.f32.mrf.mxu0
        %v864 = vadd.f32 %v789, %v863
        %v865 = vpop.f32.mrf.mxu0
        %866 = vdwg.mxu0
        %vm867 = vcmask 64512
        %v868 = vsel %vm867, %v807, -inf
        %869 = vmax.xlane.f32.xlu0 %v868
        %v870 = vpop.xlane.xlu0 %869
        %v871 = vsel %vm867, %v826, -inf
        %872 = vmax.xlane.f32.xlu0 %v871
        %v873 = vpop.xlane.xlu0 %872
        %v874 = vsel %vm867, %v845, -inf
        %875 = vmax.xlane.f32.xlu0 %v874
        %v876 = vpop.xlane.xlu0 %875
        %v877 = vsel %vm867, %v864, -inf
        %878 = vmax.xlane.f32.xlu0 %v877
        %v879 = vpop.xlane.xlu0 %878
        %v880 = vsub.f32 %v807, %v870
        %v881 = vsub.f32 %v826, %v873
        %v882 = vsub.f32 %v845, %v876
        %v883 = vsub.f32 %v864, %v879
        %v884 = vmul.f32 %v880, 1.442695
        %v885 = vpow.pop %v884
        %v886 = vmul.f32 %v881, 1.442695
        %v887 = vpow.pop %v886
        %v888 = vmul.f32 %v882, 1.442695
        %v889 = vpow.pop %v888
        %v890 = vmul.f32 %v883, 1.442695
        %v891 = vpow.pop %v890
        %v892 = vsel %vm867, %v885, 0.0
        %893 = vadd.xlane.f32.xlu0 %v892
        %v894 = vpop.xlane.xlu0 %893
        %v895 = vsel %vm867, %v887, 0.0
        %896 = vadd.xlane.f32.xlu0 %v895
        %v897 = vpop.xlane.xlu0 %896
        %v898 = vsel %vm867, %v889, 0.0
        %899 = vadd.xlane.f32.xlu0 %v898
        %v900 = vpop.xlane.xlu0 %899
        %v901 = vsel %vm867, %v891, 0.0
        %902 = vadd.xlane.f32.xlu0 %v901
        %v903 = vpop.xlane.xlu0 %902
        %v904 = vrcp.pop %v894
        %v905 = vrcp.pop %v897
        %v906 = vrcp.pop %v900
        %v907 = vrcp.pop %v903
        %v908 = vmul.f32 %v885, %v904
        %v909 = vmul.f32 %v887, %v905
        %v910 = vmul.f32 %v889, %v906
        %v911 = vmul.f32 %v891, %v907
        %v912 = vpack.c.bf16 %v908, %v908
        %v913 = vpack.c.bf16 %v909, %v909
        %v914 = vpack.c.bf16 %v910, %v910
        %v915 = vpack.c.bf16 %v911, %v911
        %v916 = vld [vmem:[#allocation4] sm:$0xf]
        %v917 = vld [vmem:[#allocation4 + $0x4] sm:$0xf]
        %v918 = vld [vmem:[#allocation4 + $0x8] sm:$0xf]
        %v919 = vld [vmem:[#allocation4 + $0xc] sm:$0xf]
        %v921 = vsel %vm867, %v912, 0
        %vm923 = vcmask 1043456
        %v925 = vsel %vm923, %v916, 0
        %927 = vmatpush.bf16.msra.mxu0 0
        %928 = vmatpush.bf16.msra.mxu0 0
        %929 = vmatpush.bf16.msra.mxu0 0
        %930 = vmatpush.bf16.msra.mxu0 0
        %931 = vmatpush.bf16.msra.mxu0 0
        %932 = vmatpush.bf16.msra.mxu0 0
        %933 = vmatpush.bf16.msra.mxu0 0
        %934 = vmatpush.bf16.msra.mxu0 %v925
        %935 = vmatmul.bf16.gmra.mxu0 %v921
        %v936 = vpop.f32.mrf.mxu0
        %v937 = vadd.f32 0.0, %v936
        %v938 = vpop.f32.mrf.mxu0
        %939 = vdwg.mxu0
        %v941 = vsel %vm867, %v913, 0
        %v944 = vsel %vm923, %v917, 0
        %946 = vmatpush.bf16.msra.mxu0 0
        %947 = vmatpush.bf16.msra.mxu0 0
        %948 = vmatpush.bf16.msra.mxu0 0
        %949 = vmatpush.bf16.msra.mxu0 0
        %950 = vmatpush.bf16.msra.mxu0 0
        %951 = vmatpush.bf16.msra.mxu0 0
        %952 = vmatpush.bf16.msra.mxu0 0
        %953 = vmatpush.bf16.msra.mxu0 %v944
        %954 = vmatmul.bf16.gmra.mxu0 %v941
        %v955 = vpop.f32.mrf.mxu0
        %v956 = vadd.f32 0.0, %v955
        %v957 = vpop.f32.mrf.mxu0
        %958 = vdwg.mxu0
        %v960 = vsel %vm867, %v914, 0
        %v963 = vsel %vm923, %v918, 0
        %965 = vmatpush.bf16.msra.mxu0 0
        %966 = vmatpush.bf16.msra.mxu0 0
        %967 = vmatpush.bf16.msra.mxu0 0
        %968 = vmatpush.bf16.msra.mxu0 0
        %969 = vmatpush.bf16.msra.mxu0 0
        %970 = vmatpush.bf16.msra.mxu0 0
        %971 = vmatpush.bf16.msra.mxu0 0
        %972 = vmatpush.bf16.msra.mxu0 %v963
        %973 = vmatmul.bf16.gmra.mxu0 %v960
        %v974 = vpop.f32.mrf.mxu0
        %v975 = vadd.f32 0.0, %v974
        %v976 = vpop.f32.mrf.mxu0
        %977 = vdwg.mxu0
        %v979 = vsel %vm867, %v915, 0
        %v982 = vsel %vm923, %v919, 0
        %984 = vmatpush.bf16.msra.mxu0 0
        %985 = vmatpush.bf16.msra.mxu0 0
        %986 = vmatpush.bf16.msra.mxu0 0
        %987 = vmatpush.bf16.msra.mxu0 0
        %988 = vmatpush.bf16.msra.mxu0 0
        %989 = vmatpush.bf16.msra.mxu0 0
        %990 = vmatpush.bf16.msra.mxu0 0
        %991 = vmatpush.bf16.msra.mxu0 %v982
        %992 = vmatmul.bf16.gmra.mxu0 %v979
        %v993 = vpop.f32.mrf.mxu0
        %v994 = vadd.f32 0.0, %v993
        %v995 = vpop.f32.mrf.mxu0
        %996 = vdwg.mxu0
        %v997 = vpack.c.bf16 %v937, %v937
        %v998 = vpack.c.bf16 %v956, %v956
        %v999 = vpack.c.bf16 %v975, %v975
        %v1000 = vpack.c.bf16 %v994, %v994
        %1001 = vst.msk [vmem:[#allocation5] sm:$0xf] %vm729, %v997
        %1003 = vrot.lane.b32.xlu0 %v998, 16
        %v1004 = vpop.permute.xlu0 %1003
        %vm1006 = vcmask 257152
        %1007 = vst.msk [vmem:[#allocation5] sm:$0xf] %vm1006, %v1004
        %1009 = vrot.lane.b32.xlu0 %v999, 32
        %v1010 = vpop.permute.xlu0 %1009
        %vm1012 = vcmask 388352
        %1013 = vst.msk [vmem:[#allocation5] sm:$0xf] %vm1012, %v1010
        %1015 = vrot.lane.b32.xlu0 %v1000, 48
        %v1016 = vpop.permute.xlu0 %1015
        %vm1018 = vcmask 519552
        %1019 = vst.msk [vmem:[#allocation5] sm:$0xf] %vm1018, %v1016
        %v1020 = vld [vmem:[#allocation5] sm:$0xf]
        %v1021 = vld [vmem:[%s9] sm:$0xf]
        %v1022 = vld [vmem:[%s9 + $0x4] sm:$0xf]
        %v1023 = vld [vmem:[%s9 + $0x8] sm:$0xf]
        %v1024 = vld [vmem:[%s9 + $0xc] sm:$0xf]
        %v1025 = vld [vmem:[%s9 + $0x10] sm:$0xf]
        %v1026 = vld [vmem:[%s9 + $0x14] sm:$0xf]
        %v1027 = vld [vmem:[%s9 + $0x18] sm:$0xf]
        %v1028 = vld [vmem:[%s9 + $0x1c] sm:$0xf]
        %v1029 = vld [vmem:[%s10] sm:$0x1]
        %v1031 = vperm.slane %v1029, 0
        %v1041 = vunpack.c.l.b16 %v1021
        %v1042 = vunpack.c.l.b16 %v1022
        %v1043 = vunpack.c.l.b16 %v1023
        %v1044 = vunpack.c.l.b16 %v1024
        %v1045 = vunpack.c.l.b16 %v1025
        %v1046 = vunpack.c.l.b16 %v1026
        %v1047 = vunpack.c.l.b16 %v1027
        %v1048 = vunpack.c.l.b16 %v1028
        %v1049 = vpack.c.b16 %v1042, %v1041
        %v1050 = vpack.c.b16 %v1044, %v1043
        %v1051 = vpack.c.b16 %v1046, %v1045
        %v1052 = vpack.c.b16 %v1048, %v1047
        %vm1057 = vcmask 523264
        %v1059 = vsel %vm1057, %v1020, 0
        %1061 = vmatpush.bf16.msra.mxu0 0
        %1062 = vmatpush.bf16.msra.mxu0 0
        %1063 = vmatpush.bf16.msra.mxu0 0
        %1064 = vmatpush.bf16.msra.mxu0 0
        %1065 = vmatpush.bf16.msra.mxu0 %v1052
        %1066 = vmatpush.bf16.msra.mxu0 %v1051
        %1067 = vmatpush.bf16.msra.mxu0 %v1050
        %1068 = vmatpush.bf16.msra.mxu0 %v1049
        %1069 = vmatmul.bf16.gmra.mxu0 %v1059
        %v1070 = vpop.f32.mrf.mxu0
        %v1071 = vadd.f32 %v1031, %v1070
        %v1072 = vpop.f32.mrf.mxu0
        %1073 = vdwg.mxu0
        %v1074 = vld [vmem:[%s15] sm:$0x1]
        %v1075 = vld [vmem:[%s16] sm:$0x1]
        %v1076 = vsel %vm639, %v1071, 0.0
        %1077 = vadd.xlane.f32.xlu0 %v1076
        %v1078 = vpop.xlane.xlu0 %1077
        %v1079 = vrcp.pop 32.0
        %v1080 = vmul.f32 32.0, %v1079
        %v1081 = vsub.f32 1.0, %v1080
        %v1082 = vmul.f32 %v1079, %v1081
        %v1083 = vadd.f32 %v1079, %v1082
        %vm1084 = vweird.f32 %v1079
        %v1085 = vsel %vm1084, %v1079, %v1083
        %v1086 = vmul.f32 %v1078, %v1085
        %v1087 = vsub.f32 %v1071, %v1086
        %v1088 = vmul.f32 %v1087, %v1087
        %v1089 = vsel %vm639, %v1088, 0.0
        %1090 = vadd.xlane.f32.xlu0 %v1089
        %v1091 = vpop.xlane.xlu0 %1090
        %v1092 = vmul.f32 %v1091, %v1085
        %v1093 = vadd.f32 %v1092, 1e-06
        %v1094 = vrsqrt.pop %v1093
        %v1095 = vmul.f32 %v1094, %v1093
        %v1096 = vmul.f32 %v1095, %v1094
        %v1097 = vmul.f32 0.5, %v1096
        %v1098 = vsub.f32 1.5, %v1097
        %v1099 = vmul.f32 %v1094, %v1098
        %vm1100 = vweird.f32 %v1093
        %vm1101 = vweird.f32 %v1094
        %vm1102 = vmor %vm1100, %vm1101
        %v1103 = vsel %vm1102, %v1094, %v1099
        %v1104 = vmul.f32 %v1087, %v1103
        %v1106 = vperm.slane %v1074, 0
        %v1108 = vmul.f32 %v1106, %v1104
        %v1110 = vperm.slane %v1075, 0
        %v1112 = vadd.f32 %v1108, %v1110
        %v1113 = vadd.f32 %v617, %v1112
        %v1114 = vpack.c.bf16 %v1113, %v1113
        %v1115 = vld [vmem:[%s11] sm:$0xf]
        %v1116 = vld [vmem:[%s11 + $0x4] sm:$0xf]
        %v1117 = vld [vmem:[%s11 + $0x8] sm:$0xf]
        %v1118 = vld [vmem:[%s11 + $0xc] sm:$0xf]
        %v1119 = vld [vmem:[%s12] sm:$0x1]
        %v1121 = vperm.slane %v1119, 0
        %v1127 = vunpack.c.l.b16 %v1115
        %v1128 = vunpack.c.l.b16 %v1116
        %v1129 = vunpack.c.l.b16 %v1117
        %v1130 = vunpack.c.l.b16 %v1118
        %v1131 = vpack.c.b16 %v1128, %v1127
        %v1132 = vpack.c.b16 %v1130, %v1129
        %v1136 = vsel %vm639, %v1114, 0
        %1138 = vmatpush.bf16.msra.mxu0 0
        %1139 = vmatpush.bf16.msra.mxu0 0
        %1140 = vmatpush.bf16.msra.mxu0 0
        %1141 = vmatpush.bf16.msra.mxu0 0
        %1142 = vmatpush.bf16.msra.mxu0 0
        %1143 = vmatpush.bf16.msra.mxu0 0
        %1144 = vmatpush.bf16.msra.mxu0 %v1132
        %1145 = vmatpush.bf16.msra.mxu0 %v1131
        %1146 = vmatmul.bf16.gmra.mxu0 %v1136
        %v1147 = vpop.f32.mrf.mxu0
        %v1148 = vadd.f32 %v1121, %v1147
        %v1149 = vpop.f32.mrf.mxu0
        %1150 = vdwg.mxu0
        %v1151 = vmax.f32 %v1148, 0.0
        %v1152 = vpack.c.bf16 %v1151, %v1151
        %v1153 = vld [vmem:[%s13] sm:$0xf]
        %v1154 = vld [vmem:[%s13 + $0x4] sm:$0xf]
        %v1155 = vld [vmem:[%s13 + $0x8] sm:$0xf]
        %v1156 = vld [vmem:[%s13 + $0xc] sm:$0xf]
        %v1157 = vld [vmem:[%s13 + $0x10] sm:$0xf]
        %v1158 = vld [vmem:[%s13 + $0x14] sm:$0xf]
        %v1159 = vld [vmem:[%s13 + $0x18] sm:$0xf]
        %v1160 = vld [vmem:[%s13 + $0x1c] sm:$0xf]
        %v1161 = vld [vmem:[%s14] sm:$0x1]
        %v1163 = vperm.slane %v1161, 0
        %v1173 = vunpack.c.l.b16 %v1153
        %v1174 = vunpack.c.l.b16 %v1154
        %v1175 = vunpack.c.l.b16 %v1155
        %v1176 = vunpack.c.l.b16 %v1156
        %v1177 = vunpack.c.l.b16 %v1157
        %v1178 = vunpack.c.l.b16 %v1158
        %v1179 = vunpack.c.l.b16 %v1159
        %v1180 = vunpack.c.l.b16 %v1160
        %v1181 = vpack.c.b16 %v1174, %v1173
        %v1182 = vpack.c.b16 %v1176, %v1175
        %v1183 = vpack.c.b16 %v1178, %v1177
        %v1184 = vpack.c.b16 %v1180, %v1179
        %v1190 = vsel %vm1057, %v1152, 0
        %1192 = vmatpush.bf16.msra.mxu0 0
        %1193 = vmatpush.bf16.msra.mxu0 0
        %1194 = vmatpush.bf16.msra.mxu0 0
        %1195 = vmatpush.bf16.msra.mxu0 0
        %1196 = vmatpush.bf16.msra.mxu0 %v1184
        %1197 = vmatpush.bf16.msra.mxu0 %v1183
        %1198 = vmatpush.bf16.msra.mxu0 %v1182
        %1199 = vmatpush.bf16.msra.mxu0 %v1181
        %1200 = vmatmul.bf16.gmra.mxu0 %v1190
        %v1201 = vpop.f32.mrf.mxu0
        %v1202 = vadd.f32 %v1163, %v1201
        %v1203 = vpop.f32.mrf.mxu0
        %1204 = vdwg.mxu0
        %v1205 = vld [vmem:[%s17] sm:$0x1]
        %v1206 = vld [vmem:[%s18] sm:$0x1]
        %v1207 = vsel %vm639, %v1202, 0.0
        %1208 = vadd.xlane.f32.xlu0 %v1207
        %v1209 = vpop.xlane.xlu0 %1208
        %v1210 = vmul.f32 %v1209, %v1085
        %v1211 = vsub.f32 %v1202, %v1210
        %v1212 = vmul.f32 %v1211, %v1211
        %v1213 = vsel %vm639, %v1212, 0.0
        %1214 = vadd.xlane.f32.xlu0 %v1213
        %v1215 = vpop.xlane.xlu0 %1214
        %v1216 = vmul.f32 %v1215, %v1085
        %v1217 = vadd.f32 %v1216, 1e-06
        %v1218 = vrsqrt.pop %v1217
        %v1219 = vmul.f32 %v1218, %v1217
        %v1220 = vmul.f32 %v1219, %v1218
        %v1221 = vmul.f32 0.5, %v1220
        %v1222 = vsub.f32 1.5, %v1221
        %v1223 = vmul.f32 %v1218, %v1222
        %vm1224 = vweird.f32 %v1217
        %vm1225 = vweird.f32 %v1218
        %vm1226 = vmor %vm1224, %vm1225
        %v1227 = vsel %vm1226, %v1218, %v1223
        %v1228 = vmul.f32 %v1211, %v1227
        %v1230 = vperm.slane %v1205, 0
        %v1232 = vmul.f32 %v1230, %v1228
        %v1234 = vperm.slane %v1206, 0
        %v1236 = vadd.f32 %v1232, %v1234
        %v1237 = vadd.f32 %v1113, %v1236
        %1238 = vst.msk [vmem:[%s606] sm:$0xff] %vm639, %v1237
        %s1239 = sand.u32 %s450, 1
        %s1240 = scalar_lea.sflag [#allocation7], %s1239
        %s1241 = sand.u32 %s450, 1
        %s1242 = smul.addr %s1241, 8
        %s1243 = scalar_lea.vmem [#allocation6], %s1242
        // Predicated region
        $region97: #{decoder_block.1} parent=95 // pred_check
          %p1244 = pneg %p460
        $region98: #{decoder_block.1} parent=95 // pred_check_branch
          %1246 = sbr.rel (%p1244) target = $region100
        $region99: #{decoder_block.1} parent=95 // pred_region
          %1248 = vsyncadd %s1240, 0
          %s1249 = smul.addr %s33, 8
          %s1250 = scalar_lea.hbm %s19, %s1249
          %s1252 = sshll.u32 %s1243, 4
          %s1253 = int_to_ptr.vmem [resolvable:$true] %s1252
          %s1254 = sshll.u32 %s1250, 4
          %s1255 = int_to_ptr.hbm [resolvable:$true] %s1254
          %1257 = dma.vmem_to_hbm [thread:$0]  %s1253, 128, %s1255, %s1240
        $region100: #{decoder_block.1} parent=95 // pred_fallthru
          _
      $region96: #{decoder_block.1} parent=5 // pred_fallthru
        _
      %p1258 = scmp.le.s32.totalorder 2, %s28
      // Predicated region
      $region101: #{decoder_block.1} parent=5 // pred_check
        %p1259 = pneg %p1258
      $region102: #{decoder_block.1} parent=5 // pred_check_branch
        %1261 = sbr.rel (%p1259) target = $region104
      $region103: #{decoder_block.1} parent=5 // pred_region
        %s1262 = ssub.s32 %s28, 2
        // Predicated region
        $region105: #{decoder_block.1} parent=103 // pred_check
          %p1263 = pneg %p466
        $region106: #{decoder_block.1} parent=103 // pred_check_branch
          %1265 = sbr.rel (%p1263) target = $region108
        $region107: #{decoder_block.1} parent=103 // pred_region
          %s1266 = sand.u32 %s451, 1
          %s1267 = scalar_lea.sflag [#allocation7], %s1266
          %s1268 = sand.u32 %s451, 1
          %s1269 = smul.addr %s1268, 8
          %s1270 = scalar_lea.vmem [#allocation6], %s1269
          %1272 = dma.done %s1267, 128
        $region108: #{decoder_block.1} parent=103 // pred_fallthru
          _
      $region104: #{decoder_block.1} parent=5 // pred_fallthru
        _
    $region6: #{decoder_block.1} parent=1 // loop_footer
      %s32 = sadd.s32 1, %s28
    $region7: #{decoder_block.1} parent=1 // loop_footer_branch
      %27 = sbr.rel target = $region3
    $region8: #{decoder_block.1} parent=1 // loop_exit
      _
    %1273 = vsyncpa [#allocation7], 1
    %s1274 = scalar_lea.sflag [#allocation7], 1
    %1275 = vsyncpa %s1274, 1

</llo_original>
